<compile_context>
chip_gen: v6e
topology: v6e:2x2x1
jax: 0.10.0
libtpu: 0.0.40
codegen_flags: <defaults>
</compile_context>

<pallas_src>
import jax
import jax.numpy as jnp
from jax.experimental import pallas as pl
from jax.experimental.pallas import tpu as pltpu


def mlp_kernel(x_ref, w1_ref, b1_ref, w2_ref, b2_ref, w3_ref, b3_ref, o_ref):
    x = x_ref[...]                                                    # (TB, D_in)
    # fc1 + relu  (MXU matmul, f32 accumulate)
    h1 = jnp.dot(x, w1_ref[...], preferred_element_type=jnp.float32) + b1_ref[...]
    h1 = jnp.maximum(h1, 0.0)
    # fc2 + relu
    h2 = jnp.dot(h1, w2_ref[...], preferred_element_type=jnp.float32) + b2_ref[...]
    h2 = jnp.maximum(h2, 0.0)
    # fc3 (out_features = 1): VPU multiply + XLU lane-reduce; bias from SMEM.
    z = jnp.sum(h2 * w3_ref[...], axis=-1, keepdims=True) + b3_ref[0, 0]   # (TB, 1)
    # Numerically stable sigmoid: no overflow for large-magnitude logits.
    e = jnp.exp(-jnp.abs(z))                                          # EUP exp
    num = jnp.where(z >= 0.0, 1.0, e)
    o_ref[...] = num * pl.reciprocal(1.0 + e, approx=False)


def _round_up(n, m):
    return ((n + m - 1) // m) * m


def _padded_tile_bytes(rows, cols, itemsize=4):
    """Bytes of one f32 VMEM tile after (8, 128) layout padding."""
    return _round_up(rows, 8) * _round_up(cols, 128) * itemsize


def _build_call(B, D_in, H1, H2, TB, grid, single_buffer_weights):
    """Construct the pallas_call.  single_buffer_weights toggles
    pipeline_mode=pl.Buffered(1) on the resident weight/bias blocks."""
    if single_buffer_weights:
        resident = lambda shape: pl.BlockSpec(
            shape, lambda i: (0, 0), pipeline_mode=pl.Buffered(1))
        w_bufs = 1
    else:
        resident = lambda shape: pl.BlockSpec(shape, lambda i: (0, 0))
        w_bufs = 2

    # Derive the scoped-VMEM limit from actual buffer sizes (padded to (8,128))
    # instead of a hard-coded constant; 2x slack for compiler scratch, 4 MiB
    # floor, capped below v7x's 64 MiB physical VMEM.
    est = (2 * _padded_tile_bytes(TB, D_in)          # x block, double-buffered
           + 2 * _padded_tile_bytes(TB, 1)           # out block, double-buffered
           + _padded_tile_bytes(TB, H1)              # h1 intermediate
           + _padded_tile_bytes(TB, H2)              # h2 intermediate
           + w_bufs * (_padded_tile_bytes(D_in, H1) + _padded_tile_bytes(1, H1)
                       + _padded_tile_bytes(H1, H2) + _padded_tile_bytes(1, H2)
                       + _padded_tile_bytes(1, H2)))
    vmem_limit = min(max(2 * est, 4 * 1024 * 1024), 64 * 1024 * 1024)

    return pl.pallas_call(
        mlp_kernel,
        out_shape=jax.ShapeDtypeStruct((B, 1), jnp.float32),
        grid=grid,
        in_specs=[
            pl.BlockSpec((TB, D_in), lambda i: (i, 0)),     # x: tiled over batch
            resident((D_in, H1)), resident((1, H1)),        # fc1 (VMEM-resident)
            resident((H1, H2)), resident((1, H2)),          # fc2 (VMEM-resident)
            resident((1, H2)),                              # fc3 weight row
            pl.BlockSpec(memory_space=pltpu.SMEM),          # fc3 bias: SMEM scalar
        ],
        out_specs=pl.BlockSpec((TB, 1), lambda i: (i, 0)),
        compiler_params=pltpu.CompilerParams(
            # batch tiles are independent -> shard across TCs on megacore parts
            dimension_semantics=("parallel",),
            vmem_limit_bytes=vmem_limit,
        ),
    )


def net_forward(x, w1, b1, w2, b2, w3, b3, *, tb=1024):
    """x: (B, D_in) f32.  w1:(D_in,H1) b1:(1,H1) w2:(H1,H2) b2:(1,H2)
    w3:(1,H2) b3:(1,1).  Returns (B, 1) f32."""
    B, D_in = x.shape
    H1 = w1.shape[1]
    H2 = w2.shape[1]

    # Large batch tile (mem/overhead-bound kernel), multiple of 8 sublanes,
    # but capped so the grid keeps >= 2 tiles whenever B allows it (v7x has
    # 2 TensorCores; grid=(1,) would leave one idle).  No padding of x: the
    # ragged last tile is handled by the pipeline.
    TB = max(8, min(tb, _round_up(pl.cdiv(B, 2), 8)))
    grid = (pl.cdiv(B, TB),)

    args = (x, w1, b1, w2, b2, w3, b3)
    try:
        return _build_call(B, D_in, H1, H2, TB, grid, True)(*args)
    except Exception:
        # pipeline_mode=pl.Buffered(1) not supported by this jax version:
        # fall back to default double-buffered weights (correctness identical).
        return _build_call(B, D_in, H1, H2, TB, grid, False)(*args)


def init_params(key, input_dim, hidden_dim):
    """Deterministic init mimicking nn.Linear default (uniform +/- 1/sqrt(fan_in)).
    fc1/fc2 weights stored as (in, out); fc3 weight stored as the (1, H2) row."""
    dims = [(input_dim, hidden_dim),
            (hidden_dim, hidden_dim // 2),
            (hidden_dim // 2, 1)]
    params = []
    for layer, (fan_in, fan_out) in enumerate(dims):
        key, kw, kb = jax.random.split(key, 3)
        bound = 1.0 / jnp.sqrt(fan_in)
        if layer < 2:
            w = jax.random.uniform(kw, (fan_in, fan_out), jnp.float32, -bound, bound)
        else:
            # fc3: keep as a single (1, fan_in) row for the VPU-reduce path
            w = jax.random.uniform(kw, (1, fan_in), jnp.float32, -bound, bound)
        b = jax.random.uniform(kb, (1, fan_out), jnp.float32, -bound, bound)
        params += [w, b]
    return params


def reference_forward(x, w1, b1, w2, b2, w3, b3):
    h1 = jnp.maximum(x @ w1 + b1, 0.0)
    h2 = jnp.maximum(h1 @ w2 + b2, 0.0)
    return jax.nn.sigmoid(h2 @ w3.T + b3)


if __name__ == "__main__":
    # batch=100 is NOT a multiple of the chosen tile, so this exercises both
    # multi-tile execution (grid=(2,), TB=56) and the ragged last tile.
    batch, input_dim, hidden_dim = 100, 16, 32

    key = jax.random.PRNGKey(0)
    key, kx = jax.random.split(key)
    x = jax.random.normal(kx, (batch, input_dim), jnp.float32)

    w1, b1, w2, b2, w3, b3 = init_params(key, input_dim, hidden_dim)

    out = net_forward(x, w1, b1, w2, b2, w3, b3)
    out = jax.block_until_ready(out)

    ref = reference_forward(x, w1, b1, w2, b2, w3, b3)
    assert out.shape == (batch, 1)
    assert jnp.allclose(out, ref, atol=1e-5, rtol=1e-5), "mismatch vs reference"

    print("KERNEL_OK")
</pallas_src>

<mosaic_0001>
module attributes {stable_mosaic.version = 11 : i64} {
  func.func @mlp_kernel(%arg0: i32, %arg1: memref<56x16xf32, #tpu.memory_space<vmem>>, %arg2: memref<16x32xf32, #tpu.memory_space<vmem>>, %arg3: memref<1x32xf32, #tpu.memory_space<vmem>>, %arg4: memref<32x16xf32, #tpu.memory_space<vmem>>, %arg5: memref<1x16xf32, #tpu.memory_space<vmem>>, %arg6: memref<1x16xf32, #tpu.memory_space<vmem>>, %arg7: memref<1x1xf32, #tpu.memory_space<smem>>, %arg8: memref<56x1xf32, #tpu.memory_space<vmem>>) attributes {dimension_semantics = [#tpu.dimension_semantics<parallel>], iteration_bounds = array<i64: 2>, scalar_prefetch = 0 : i64, scratch_operands = 0 : i64, tpu.core_type = #tpu.core_type<tc>, window_params = [{transform_indices = @transform_0, window_bounds = array<i64: 56, 16>}, {pipeline_mode = #tpu.pipeline_mode<synchronous>, transform_indices = @transform_1, window_bounds = array<i64: 16, 32>}, {pipeline_mode = #tpu.pipeline_mode<synchronous>, transform_indices = @transform_2, window_bounds = array<i64: 1, 32>}, {pipeline_mode = #tpu.pipeline_mode<synchronous>, transform_indices = @transform_3, window_bounds = array<i64: 32, 16>}, {pipeline_mode = #tpu.pipeline_mode<synchronous>, transform_indices = @transform_4, window_bounds = array<i64: 1, 16>}, {pipeline_mode = #tpu.pipeline_mode<synchronous>, transform_indices = @transform_5, window_bounds = array<i64: 1, 16>}, {transform_indices = @transform_6, window_bounds = array<i64: 1, 1>}, {transform_indices = @transform_7, window_bounds = array<i64: 56, 1>}]} {
    %c0 = arith.constant 0 : index
    %c0_0 = arith.constant 0 : index
    %0 = vector.load %arg1[%c0, %c0_0] : memref<56x16xf32, #tpu.memory_space<vmem>>, vector<56x16xf32>
    %c0_1 = arith.constant 0 : index
    %c0_2 = arith.constant 0 : index
    %1 = vector.load %arg2[%c0_1, %c0_2] : memref<16x32xf32, #tpu.memory_space<vmem>>, vector<16x32xf32>
    %cst = arith.constant dense<0.000000e+00> : vector<56x32xf32>
    %2 = tpu.matmul %0, %1, %cst {dimension_numbers = #tpu.dot_dimension_numbers<[1], [0], [0], [1], [0, 0, 1, 1], [], []>} : vector<56x16xf32>, vector<16x32xf32>, vector<56x32xf32> -> vector<56x32xf32>
    %c0_3 = arith.constant 0 : index
    %c0_4 = arith.constant 0 : index
    %3 = vector.load %arg3[%c0_3, %c0_4] : memref<1x32xf32, #tpu.memory_space<vmem>>, vector<1x32xf32>
    %4 = vector.broadcast %3 : vector<1x32xf32> to vector<56x32xf32>
    %5 = arith.addf %2, %4 : vector<56x32xf32>
    %cst_5 = arith.constant 0.000000e+00 : f32
    %6 = vector.broadcast %cst_5 : f32 to vector<56x32xf32>
    %7 = arith.maximumf %5, %6 : vector<56x32xf32>
    %c0_6 = arith.constant 0 : index
    %c0_7 = arith.constant 0 : index
    %8 = vector.load %arg4[%c0_6, %c0_7] : memref<32x16xf32, #tpu.memory_space<vmem>>, vector<32x16xf32>
    %cst_8 = arith.constant dense<0.000000e+00> : vector<56x16xf32>
    %9 = tpu.matmul %7, %8, %cst_8 {dimension_numbers = #tpu.dot_dimension_numbers<[1], [0], [0], [1], [0, 0, 1, 1], [], []>} : vector<56x32xf32>, vector<32x16xf32>, vector<56x16xf32> -> vector<56x16xf32>
    %c0_9 = arith.constant 0 : index
    %c0_10 = arith.constant 0 : index
    %10 = vector.load %arg5[%c0_9, %c0_10] : memref<1x16xf32, #tpu.memory_space<vmem>>, vector<1x16xf32>
    %11 = vector.broadcast %10 : vector<1x16xf32> to vector<56x16xf32>
    %12 = arith.addf %9, %11 : vector<56x16xf32>
    %cst_11 = arith.constant 0.000000e+00 : f32
    %13 = vector.broadcast %cst_11 : f32 to vector<56x16xf32>
    %14 = arith.maximumf %12, %13 : vector<56x16xf32>
    %c0_12 = arith.constant 0 : index
    %c0_13 = arith.constant 0 : index
    %15 = vector.load %arg6[%c0_12, %c0_13] : memref<1x16xf32, #tpu.memory_space<vmem>>, vector<1x16xf32>
    %16 = vector.broadcast %15 : vector<1x16xf32> to vector<56x16xf32>
    %17 = arith.mulf %14, %16 : vector<56x16xf32>
    %cst_14 = arith.constant dense<0.000000e+00> : vector<56xf32>
    %18 = vector.multi_reduction <add>, %17, %cst_14 [1] : vector<56x16xf32> to vector<56xf32>
    %19 = vector.shape_cast %18 : vector<56xf32> to vector<56x1xf32>
    %c0_15 = arith.constant 0 : index
    %c0_16 = arith.constant 0 : index
    %20 = memref.load %arg7[%c0_15, %c0_16] : memref<1x1xf32, #tpu.memory_space<smem>>
    %21 = vector.broadcast %20 : f32 to vector<56x1xf32>
    %22 = arith.addf %19, %21 : vector<56x1xf32>
    %23 = math.absf %22 : vector<56x1xf32>
    %cst_17 = arith.constant 0.000000e+00 : f32
    %24 = vector.broadcast %cst_17 : f32 to vector<56x1xf32>
    %25 = arith.subf %24, %23 : vector<56x1xf32>
    %26 = math.exp %25 : vector<56x1xf32>
    %cst_18 = arith.constant 0.000000e+00 : f32
    %27 = vector.broadcast %cst_18 : f32 to vector<56x1xf32>
    %28 = arith.cmpf oge, %22, %27 : vector<56x1xf32>
    %cst_19 = arith.constant 1.000000e+00 : f32
    %29 = vector.broadcast %cst_19 : f32 to vector<56x1xf32>
    %30 = arith.select %28, %29, %26 : vector<56x1xi1>, vector<56x1xf32>
    %cst_20 = arith.constant 1.000000e+00 : f32
    %31 = vector.broadcast %cst_20 : f32 to vector<56x1xf32>
    %32 = arith.addf %31, %26 : vector<56x1xf32>
    %33 = tpu.reciprocal %32 : vector<56x1xf32> -> vector<56x1xf32>
    %34 = arith.mulf %30, %33 : vector<56x1xf32>
    %c0_21 = arith.constant 0 : index
    %c0_22 = arith.constant 0 : index
    %35 = vector.load %arg8[%c0_21, %c0_22] : memref<56x1xf32, #tpu.memory_space<vmem>>, vector<56x1xf32>
    tpu.vector_store %arg8[%c0_21, %c0_22], %34 {strides = array<i32>} : memref<56x1xf32, #tpu.memory_space<vmem>>, vector<56x1xf32>,
    return
  }
  func.func @transform_0(%arg0: i32) -> (i32, i32) {
    %c0_i32 = arith.constant 0 : i32
    %c0_i32_0 = arith.constant 0 : i32
    return %arg0, %c0_i32 : i32, i32
  }
  func.func @transform_1(%arg0: i32) -> (i32, i32) {
    %c0_i32 = arith.constant 0 : i32
    %c0_i32_0 = arith.constant 0 : i32
    %c0_i32_1 = arith.constant 0 : i32
    return %c0_i32, %c0_i32_0 : i32, i32
  }
  func.func @transform_2(%arg0: i32) -> (i32, i32) {
    %c0_i32 = arith.constant 0 : i32
    %c0_i32_0 = arith.constant 0 : i32
    %c0_i32_1 = arith.constant 0 : i32
    return %c0_i32, %c0_i32_0 : i32, i32
  }
  func.func @transform_3(%arg0: i32) -> (i32, i32) {
    %c0_i32 = arith.constant 0 : i32
    %c0_i32_0 = arith.constant 0 : i32
    %c0_i32_1 = arith.constant 0 : i32
    return %c0_i32, %c0_i32_0 : i32, i32
  }
  func.func @transform_4(%arg0: i32) -> (i32, i32) {
    %c0_i32 = arith.constant 0 : i32
    %c0_i32_0 = arith.constant 0 : i32
    %c0_i32_1 = arith.constant 0 : i32
    return %c0_i32, %c0_i32_0 : i32, i32
  }
  func.func @transform_5(%arg0: i32) -> (i32, i32) {
    %c0_i32 = arith.constant 0 : i32
    %c0_i32_0 = arith.constant 0 : i32
    %c0_i32_1 = arith.constant 0 : i32
    return %c0_i32, %c0_i32_0 : i32, i32
  }
  func.func @transform_6(%arg0: i32) -> (i32, i32) {
    %c0_i32 = arith.constant 0 : i32
    %c0_i32_0 = arith.constant 0 : i32
    %c0_i32_1 = arith.constant 0 : i32
    return %c0_i32, %c0_i32_0 : i32, i32
  }
  func.func @transform_7(%arg0: i32) -> (i32, i32) {
    %c0_i32 = arith.constant 0 : i32
    %c0_i32_0 = arith.constant 0 : i32
    return %arg0, %c0_i32 : i32, i32
  }
}

module attributes {stable_mosaic.version = 11 : i64} {
  func.func @mlp_kernel(%arg0: i32, %arg1: memref<56x16xf32, #tpu.memory_space<vmem>>, %arg2: memref<16x32xf32, #tpu.memory_space<vmem>>, %arg3: memref<1x32xf32, #tpu.memory_space<vmem>>, %arg4: memref<32x16xf32, #tpu.memory_space<vmem>>, %arg5: memref<1x16xf32, #tpu.memory_space<vmem>>, %arg6: memref<1x16xf32, #tpu.memory_space<vmem>>, %arg7: memref<1x1xf32, #tpu.memory_space<smem>>, %arg8: memref<56x1xf32, #tpu.memory_space<vmem>>) attributes {dimension_semantics = [#tpu.dimension_semantics<parallel>], iteration_bounds = array<i64: 2>, scalar_prefetch = 0 : i64, scratch_operands = 0 : i64, tpu.core_type = #tpu.core_type<tc>, window_params = [{transform_indices = @transform_0, window_bounds = array<i64: 56, 16>}, {pipeline_mode = #tpu.pipeline_mode<synchronous>, transform_indices = @transform_1, window_bounds = array<i64: 16, 32>}, {pipeline_mode = #tpu.pipeline_mode<synchronous>, transform_indices = @transform_2, window_bounds = array<i64: 1, 32>}, {pipeline_mode = #tpu.pipeline_mode<synchronous>, transform_indices = @transform_3, window_bounds = array<i64: 32, 16>}, {pipeline_mode = #tpu.pipeline_mode<synchronous>, transform_indices = @transform_4, window_bounds = array<i64: 1, 16>}, {pipeline_mode = #tpu.pipeline_mode<synchronous>, transform_indices = @transform_5, window_bounds = array<i64: 1, 16>}, {transform_indices = @transform_6, window_bounds = array<i64: 1, 1>}, {transform_indices = @transform_7, window_bounds = array<i64: 56, 1>}]} {
    %c0 = arith.constant 0 : index
    %c0_0 = arith.constant 0 : index
    %0 = vector.load %arg1[%c0, %c0_0] : memref<56x16xf32, #tpu.memory_space<vmem>>, vector<56x16xf32>
    %c0_1 = arith.constant 0 : index
    %c0_2 = arith.constant 0 : index
    %1 = vector.load %arg2[%c0_1, %c0_2] : memref<16x32xf32, #tpu.memory_space<vmem>>, vector<16x32xf32>
    %cst = arith.constant dense<0.000000e+00> : vector<56x32xf32>
    %2 = tpu.matmul %0, %1, %cst {dimension_numbers = #tpu.dot_dimension_numbers<[1], [0], [0], [1], [0, 0, 1, 1], [], []>} : vector<56x16xf32>, vector<16x32xf32>, vector<56x32xf32> -> vector<56x32xf32>
    %c0_3 = arith.constant 0 : index
    %c0_4 = arith.constant 0 : index
    %3 = vector.load %arg3[%c0_3, %c0_4] : memref<1x32xf32, #tpu.memory_space<vmem>>, vector<1x32xf32>
    %4 = vector.broadcast %3 : vector<1x32xf32> to vector<56x32xf32>
    %5 = arith.addf %2, %4 : vector<56x32xf32>
    %cst_5 = arith.constant 0.000000e+00 : f32
    %6 = vector.broadcast %cst_5 : f32 to vector<56x32xf32>
    %7 = arith.maximumf %5, %6 : vector<56x32xf32>
    %c0_6 = arith.constant 0 : index
    %c0_7 = arith.constant 0 : index
    %8 = vector.load %arg4[%c0_6, %c0_7] : memref<32x16xf32, #tpu.memory_space<vmem>>, vector<32x16xf32>
    %cst_8 = arith.constant dense<0.000000e+00> : vector<56x16xf32>
    %9 = tpu.matmul %7, %8, %cst_8 {dimension_numbers = #tpu.dot_dimension_numbers<[1], [0], [0], [1], [0, 0, 1, 1], [], []>} : vector<56x32xf32>, vector<32x16xf32>, vector<56x16xf32> -> vector<56x16xf32>
    %c0_9 = arith.constant 0 : index
    %c0_10 = arith.constant 0 : index
    %10 = vector.load %arg5[%c0_9, %c0_10] : memref<1x16xf32, #tpu.memory_space<vmem>>, vector<1x16xf32>
    %11 = vector.broadcast %10 : vector<1x16xf32> to vector<56x16xf32>
    %12 = arith.addf %9, %11 : vector<56x16xf32>
    %cst_11 = arith.constant 0.000000e+00 : f32
    %13 = vector.broadcast %cst_11 : f32 to vector<56x16xf32>
    %14 = arith.maximumf %12, %13 : vector<56x16xf32>
    %c0_12 = arith.constant 0 : index
    %c0_13 = arith.constant 0 : index
    %15 = vector.load %arg6[%c0_12, %c0_13] : memref<1x16xf32, #tpu.memory_space<vmem>>, vector<1x16xf32>
    %16 = vector.broadcast %15 : vector<1x16xf32> to vector<56x16xf32>
    %17 = arith.mulf %14, %16 : vector<56x16xf32>
    %cst_14 = arith.constant dense<0.000000e+00> : vector<56xf32>
    %18 = vector.multi_reduction <add>, %17, %cst_14 [1] : vector<56x16xf32> to vector<56xf32>
    %19 = vector.shape_cast %18 : vector<56xf32> to vector<56x1xf32>
    %c0_15 = arith.constant 0 : index
    %c0_16 = arith.constant 0 : index
    %20 = memref.load %arg7[%c0_15, %c0_16] : memref<1x1xf32, #tpu.memory_space<smem>>
    %21 = vector.broadcast %20 : f32 to vector<56x1xf32>
    %22 = arith.addf %19, %21 : vector<56x1xf32>
    %23 = math.absf %22 : vector<56x1xf32>
    %cst_17 = arith.constant 0.000000e+00 : f32
    %24 = vector.broadcast %cst_17 : f32 to vector<56x1xf32>
    %25 = arith.subf %24, %23 : vector<56x1xf32>
    %26 = math.exp %25 : vector<56x1xf32>
    %cst_18 = arith.constant 0.000000e+00 : f32
    %27 = vector.broadcast %cst_18 : f32 to vector<56x1xf32>
    %28 = arith.cmpf oge, %22, %27 : vector<56x1xf32>
    %cst_19 = arith.constant 1.000000e+00 : f32
    %29 = vector.broadcast %cst_19 : f32 to vector<56x1xf32>
    %30 = arith.select %28, %29, %26 : vector<56x1xi1>, vector<56x1xf32>
    %cst_20 = arith.constant 1.000000e+00 : f32
    %31 = vector.broadcast %cst_20 : f32 to vector<56x1xf32>
    %32 = arith.addf %31, %26 : vector<56x1xf32>
    %33 = tpu.reciprocal %32 : vector<56x1xf32> -> vector<56x1xf32>
    %34 = arith.mulf %30, %33 : vector<56x1xf32>
    %c0_21 = arith.constant 0 : index
    %c0_22 = arith.constant 0 : index
    %35 = vector.load %arg8[%c0_21, %c0_22] : memref<56x1xf32, #tpu.memory_space<vmem>>, vector<56x1xf32>
    tpu.vector_store %arg8[%c0_21, %c0_22], %34 {strides = array<i32>} : memref<56x1xf32, #tpu.memory_space<vmem>>, vector<56x1xf32>,
    return
  }
  func.func @transform_0(%arg0: i32) -> (i32, i32) {
    %c0_i32 = arith.constant 0 : i32
    %c0_i32_0 = arith.constant 0 : i32
    return %arg0, %c0_i32 : i32, i32
  }
  func.func @transform_1(%arg0: i32) -> (i32, i32) {
    %c0_i32 = arith.constant 0 : i32
    %c0_i32_0 = arith.constant 0 : i32
    %c0_i32_1 = arith.constant 0 : i32
    return %c0_i32, %c0_i32_0 : i32, i32
  }
  func.func @transform_2(%arg0: i32) -> (i32, i32) {
    %c0_i32 = arith.constant 0 : i32
    %c0_i32_0 = arith.constant 0 : i32
    %c0_i32_1 = arith.constant 0 : i32
    return %c0_i32, %c0_i32_0 : i32, i32
  }
  func.func @transform_3(%arg0: i32) -> (i32, i32) {
    %c0_i32 = arith.constant 0 : i32
    %c0_i32_0 = arith.constant 0 : i32
    %c0_i32_1 = arith.constant 0 : i32
    return %c0_i32, %c0_i32_0 : i32, i32
  }
  func.func @transform_4(%arg0: i32) -> (i32, i32) {
    %c0_i32 = arith.constant 0 : i32
    %c0_i32_0 = arith.constant 0 : i32
    %c0_i32_1 = arith.constant 0 : i32
    return %c0_i32, %c0_i32_0 : i32, i32
  }
  func.func @transform_5(%arg0: i32) -> (i32, i32) {
    %c0_i32 = arith.constant 0 : i32
    %c0_i32_0 = arith.constant 0 : i32
    %c0_i32_1 = arith.constant 0 : i32
    return %c0_i32, %c0_i32_0 : i32, i32
  }
  func.func @transform_6(%arg0: i32) -> (i32, i32) {
    %c0_i32 = arith.constant 0 : i32
    %c0_i32_0 = arith.constant 0 : i32
    %c0_i32_1 = arith.constant 0 : i32
    return %c0_i32, %c0_i32_0 : i32, i32
  }
  func.func @transform_7(%arg0: i32) -> (i32, i32) {
    %c0_i32 = arith.constant 0 : i32
    %c0_i32_0 = arith.constant 0 : i32
    return %arg0, %c0_i32 : i32, i32
  }
}

</mosaic_0001>

<llo_original>
// kernel: tpu_custom_call.1
$region0: #{tpu_custom_call.1}
  #allocation0 [shape = 'u32[]', space=smem, size = 0x4, offset = 0x4, fixed_abs, tag = 'smem constant byte address 0x4 - core index']
  #allocation1 [shape = 'u32[144,128]{1,0:T(1,128)}', space=vmem, size = 0x12000, scoped, tag = 'internal scratch']
  #allocation2 [shape = 'f32[1,1]{1,0:T(1,128)S(6)}', space=smem, size = 0x200, scoped, tag = 'scoped memory for tpu_custom_call.1']
  %s0 = inlined_call_operand.vmem [shape: f32[100,16], index: 0, kind: input, shape index: {}]
  %s1 = inlined_call_operand.vmem [shape: f32[16,32], index: 1, kind: input, shape index: {}]
  %s2 = inlined_call_operand.vmem [shape: f32[1,32], index: 2, kind: input, shape index: {}]
  %s3 = inlined_call_operand.vmem [shape: f32[32,16], index: 3, kind: input, shape index: {}]
  %s4 = inlined_call_operand.vmem [shape: f32[1,16], index: 4, kind: input, shape index: {}]
  %s5 = inlined_call_operand.vmem [shape: f32[1,16], index: 5, kind: input, shape index: {}]
  %s6 = inlined_call_operand.<no memory space> [shape: f32[1,1], index: 6, kind: input, shape index: {}]
  %s7 = inlined_call_operand.vmem [shape: f32[100,1], index: 7, kind: output, shape index: {}]
  %s8 = sld [smem:[#allocation0]]
  $region109: #{tpu_custom_call.1} parent=0
    _
  %s10 = ssub.s32 1, %s8
  %s11 = scalar_select 0, %s10, %s8
  %12 = sst [smem:[#allocation2]] %s6
  $region1: #{tpu_custom_call.1} parent=0
    #allocation3 [shape = 'u8[57344]{0}', space=vmem, size = 0xe000, scoped, tag = 'output window, operand 0']
    loop: start=0, step=1, limit=4
    $region2: #{tpu_custom_call.1} parent=1 // loop_pre_header
      _
    $region3: #{tpu_custom_call.1} parent=1 // loop_header
      %s14 = sphi 0, %s18
      %p15 = scmp.ge.s32.totalorder %s14, 4
      %s24 = sphi 0, %s26
      %s27 = sphi 0, %s24
      %s28 = sphi 0, %s27
      %s44 = sphi 0, %s28
      %s48 = sphi 0, %s48
      %s50 = sphi 0, %s48
      %s51 = sphi 0, %s50
      %s65 = sphi 0, %s51
      %s69 = sphi 0, %s69
      %s71 = sphi 0, %s69
      %s72 = sphi 0, %s71
      %s86 = sphi 0, %s72
      %s90 = sphi 0, %s90
      %s92 = sphi 0, %s90
      %s93 = sphi 0, %s92
      %s107 = sphi 0, %s93
      %s111 = sphi 0, %s111
      %s113 = sphi 0, %s111
      %s114 = sphi 0, %s113
      %s128 = sphi 0, %s114
      %s132 = sphi 0, %s132
      %s134 = sphi 0, %s132
      %s135 = sphi 0, %s134
      %s149 = sphi 0, %s135
      %s153 = sphi 0, %s153
      %s155 = sphi 0, %s153
      %s156 = sphi 0, %s155
      %s170 = sphi 0, %s156
      %s176 = sphi 0, %s178
      %s179 = sphi 0, %s176
      %s180 = sphi 0, %s179
      %s196 = sphi 0, %s180
    $region4: #{tpu_custom_call.1} parent=1 // loop_header_branch
      %17 = sbr.rel (%p15) target = $region8
    $region5: #{tpu_custom_call.1} parent=1 // loop_body
      %s19 = ssub.s32 %s14, 1
      %s20 = ssub.s32 %s14, 2
      %s21 = sadd.s32 %s14, 1
      %s22 = ssub.s32 %s14, %s21
      %p23 = scmp.eq.s32.totalorder %s22, 0
      %s25 = sadd.s32 %s24, 1
      %s26 = scalar_select %p23, %s24, %s25
      %p29 = pneg %p23
      %p30 = scmp.eq.s32.totalorder %s14, 1
      %p31 = por %p29, %p30
      %p32 = scmp.ne.s32.totalorder %s24, %s27
      %p33 = scmp.eq.s32.totalorder %s14, 0
      %p34 = por %p32, %p33
      %p35 = scmp.ne.s32.totalorder %s24, %s27
      %p36 = scmp.eq.s32.totalorder %s19, 1
      %p37 = por %p35, %p36
      %p38 = scmp.ne.s32.totalorder %s27, %s28
      %p39 = scmp.eq.s32.totalorder %s19, 0
      %p40 = por %p38, %p39
      %p41 = scmp.ne.s32.totalorder %s27, %s28
      %p42 = scmp.eq.s32.totalorder %s20, 1
      %p43 = por %p41, %p42
      %p45 = scmp.ne.s32.totalorder %s28, %s44
      %p46 = scmp.eq.s32.totalorder %s20, 0
      %p47 = por %p45, %p46
      %s49 = sadd.s32 %s48, 1
      %p52 = scmp.eq.s32.totalorder %s14, 1
      %p53 = scmp.ne.s32.totalorder %s48, %s50
      %p54 = scmp.eq.s32.totalorder %s14, 0
      %p55 = por %p53, %p54
      %p56 = scmp.ne.s32.totalorder %s48, %s50
      %p57 = scmp.eq.s32.totalorder %s19, 1
      %p58 = por %p56, %p57
      %p59 = scmp.ne.s32.totalorder %s50, %s51
      %p60 = scmp.eq.s32.totalorder %s19, 0
      %p61 = por %p59, %p60
      %p62 = scmp.ne.s32.totalorder %s50, %s51
      %p63 = scmp.eq.s32.totalorder %s20, 1
      %p64 = por %p62, %p63
      %p66 = scmp.ne.s32.totalorder %s51, %s65
      %p67 = scmp.eq.s32.totalorder %s20, 0
      %p68 = por %p66, %p67
      %s70 = sadd.s32 %s69, 1
      %p73 = scmp.eq.s32.totalorder %s14, 1
      %p74 = scmp.ne.s32.totalorder %s69, %s71
      %p75 = scmp.eq.s32.totalorder %s14, 0
      %p76 = por %p74, %p75
      %p77 = scmp.ne.s32.totalorder %s69, %s71
      %p78 = scmp.eq.s32.totalorder %s19, 1
      %p79 = por %p77, %p78
      %p80 = scmp.ne.s32.totalorder %s71, %s72
      %p81 = scmp.eq.s32.totalorder %s19, 0
      %p82 = por %p80, %p81
      %p83 = scmp.ne.s32.totalorder %s71, %s72
      %p84 = scmp.eq.s32.totalorder %s20, 1
      %p85 = por %p83, %p84
      %p87 = scmp.ne.s32.totalorder %s72, %s86
      %p88 = scmp.eq.s32.totalorder %s20, 0
      %p89 = por %p87, %p88
      %s91 = sadd.s32 %s90, 1
      %p94 = scmp.eq.s32.totalorder %s14, 1
      %p95 = scmp.ne.s32.totalorder %s90, %s92
      %p96 = scmp.eq.s32.totalorder %s14, 0
      %p97 = por %p95, %p96
      %p98 = scmp.ne.s32.totalorder %s90, %s92
      %p99 = scmp.eq.s32.totalorder %s19, 1
      %p100 = por %p98, %p99
      %p101 = scmp.ne.s32.totalorder %s92, %s93
      %p102 = scmp.eq.s32.totalorder %s19, 0
      %p103 = por %p101, %p102
      %p104 = scmp.ne.s32.totalorder %s92, %s93
      %p105 = scmp.eq.s32.totalorder %s20, 1
      %p106 = por %p104, %p105
      %p108 = scmp.ne.s32.totalorder %s93, %s107
      %p109 = scmp.eq.s32.totalorder %s20, 0
      %p110 = por %p108, %p109
      %s112 = sadd.s32 %s111, 1
      %p115 = scmp.eq.s32.totalorder %s14, 1
      %p116 = scmp.ne.s32.totalorder %s111, %s113
      %p117 = scmp.eq.s32.totalorder %s14, 0
      %p118 = por %p116, %p117
      %p119 = scmp.ne.s32.totalorder %s111, %s113
      %p120 = scmp.eq.s32.totalorder %s19, 1
      %p121 = por %p119, %p120
      %p122 = scmp.ne.s32.totalorder %s113, %s114
      %p123 = scmp.eq.s32.totalorder %s19, 0
      %p124 = por %p122, %p123
      %p125 = scmp.ne.s32.totalorder %s113, %s114
      %p126 = scmp.eq.s32.totalorder %s20, 1
      %p127 = por %p125, %p126
      %p129 = scmp.ne.s32.totalorder %s114, %s128
      %p130 = scmp.eq.s32.totalorder %s20, 0
      %p131 = por %p129, %p130
      %s133 = sadd.s32 %s132, 1
      %p136 = scmp.eq.s32.totalorder %s14, 1
      %p137 = scmp.ne.s32.totalorder %s132, %s134
      %p138 = scmp.eq.s32.totalorder %s14, 0
      %p139 = por %p137, %p138
      %p140 = scmp.ne.s32.totalorder %s132, %s134
      %p141 = scmp.eq.s32.totalorder %s19, 1
      %p142 = por %p140, %p141
      %p143 = scmp.ne.s32.totalorder %s134, %s135
      %p144 = scmp.eq.s32.totalorder %s19, 0
      %p145 = por %p143, %p144
      %p146 = scmp.ne.s32.totalorder %s134, %s135
      %p147 = scmp.eq.s32.totalorder %s20, 1
      %p148 = por %p146, %p147
      %p150 = scmp.ne.s32.totalorder %s135, %s149
      %p151 = scmp.eq.s32.totalorder %s20, 0
      %p152 = por %p150, %p151
      %s154 = sadd.s32 %s153, 1
      %p157 = scmp.eq.s32.totalorder %s14, 1
      %p158 = scmp.ne.s32.totalorder %s153, %s155
      %p159 = scmp.eq.s32.totalorder %s14, 0
      %p160 = por %p158, %p159
      %p161 = scmp.ne.s32.totalorder %s153, %s155
      %p162 = scmp.eq.s32.totalorder %s19, 1
      %p163 = por %p161, %p162
      %p164 = scmp.ne.s32.totalorder %s155, %s156
      %p165 = scmp.eq.s32.totalorder %s19, 0
      %p166 = por %p164, %p165
      %p167 = scmp.ne.s32.totalorder %s155, %s156
      %p168 = scmp.eq.s32.totalorder %s20, 1
      %p169 = por %p167, %p168
      %p171 = scmp.ne.s32.totalorder %s156, %s170
      %p172 = scmp.eq.s32.totalorder %s20, 0
      %p173 = por %p171, %p172
      %s174 = ssub.s32 %s14, %s21
      %p175 = scmp.eq.s32.totalorder %s174, 0
      %s177 = sadd.s32 %s176, 1
      %s178 = scalar_select %p175, %s176, %s177
      %p181 = pneg %p175
      %p182 = scmp.eq.s32.totalorder %s14, 1
      %p183 = por %p181, %p182
      %p184 = scmp.ne.s32.totalorder %s176, %s179
      %p185 = scmp.eq.s32.totalorder %s14, 0
      %p186 = por %p184, %p185
      %p187 = scmp.ne.s32.totalorder %s176, %s179
      %p188 = scmp.eq.s32.totalorder %s19, 1
      %p189 = por %p187, %p188
      %p190 = scmp.ne.s32.totalorder %s179, %s180
      %p191 = scmp.eq.s32.totalorder %s19, 0
      %p192 = por %p190, %p191
      %p193 = scmp.ne.s32.totalorder %s179, %s180
      %p194 = scmp.eq.s32.totalorder %s20, 1
      %p195 = por %p193, %p194
      %p197 = scmp.ne.s32.totalorder %s180, %s196
      %p198 = scmp.eq.s32.totalorder %s20, 0
      %p199 = por %p197, %p198
      %p200 = scmp.le.s32.totalorder 1, %s14
      %p201 = scmp.lt.s32.totalorder %s14, 3
      %p202 = pnand %p200, %p201
      %p203 = pneg %p202
      // Predicated region
      $region9: #{tpu_custom_call.1} parent=5 // pred_check
        _
      $region10: #{tpu_custom_call.1} parent=5 // pred_check_branch
        %205 = sbr.rel (%p202) target = $region12
      $region11: #{tpu_custom_call.1} parent=5 // pred_region
        %s206 = ssub.s32 %s14, 1
        // Predicated region
        $region13: #{tpu_custom_call.1} parent=11 // pred_check
          %p207 = pneg %p61
        $region14: #{tpu_custom_call.1} parent=11 // pred_check_branch
          %209 = sbr.rel (%p207) target = $region16
        $region15: #{tpu_custom_call.1} parent=11 // pred_region
          _
        $region16: #{tpu_custom_call.1} parent=11 // pred_fallthru
          _
        // Predicated region
        $region17: #{tpu_custom_call.1} parent=11 // pred_check
          %p210 = pneg %p82
        $region18: #{tpu_custom_call.1} parent=11 // pred_check_branch
          %212 = sbr.rel (%p210) target = $region20
        $region19: #{tpu_custom_call.1} parent=11 // pred_region
          _
        $region20: #{tpu_custom_call.1} parent=11 // pred_fallthru
          _
        // Predicated region
        $region21: #{tpu_custom_call.1} parent=11 // pred_check
          %p213 = pneg %p103
        $region22: #{tpu_custom_call.1} parent=11 // pred_check_branch
          %215 = sbr.rel (%p213) target = $region24
        $region23: #{tpu_custom_call.1} parent=11 // pred_region
          _
        $region24: #{tpu_custom_call.1} parent=11 // pred_fallthru
          _
        // Predicated region
        $region25: #{tpu_custom_call.1} parent=11 // pred_check
          %p216 = pneg %p124
        $region26: #{tpu_custom_call.1} parent=11 // pred_check_branch
          %218 = sbr.rel (%p216) target = $region28
        $region27: #{tpu_custom_call.1} parent=11 // pred_region
          _
        $region28: #{tpu_custom_call.1} parent=11 // pred_fallthru
          _
        // Predicated region
        $region29: #{tpu_custom_call.1} parent=11 // pred_check
          %p219 = pneg %p145
        $region30: #{tpu_custom_call.1} parent=11 // pred_check_branch
          %221 = sbr.rel (%p219) target = $region32
        $region31: #{tpu_custom_call.1} parent=11 // pred_region
          _
        $region32: #{tpu_custom_call.1} parent=11 // pred_fallthru
          _
        // Predicated region
        $region33: #{tpu_custom_call.1} parent=11 // pred_check
          %p222 = pneg %p166
        $region34: #{tpu_custom_call.1} parent=11 // pred_check_branch
          %224 = sbr.rel (%p222) target = $region36
        $region35: #{tpu_custom_call.1} parent=11 // pred_region
          _
        $region36: #{tpu_custom_call.1} parent=11 // pred_fallthru
          _
      $region12: #{tpu_custom_call.1} parent=5 // pred_fallthru
        _
      %p225 = scmp.lt.s32.totalorder %s14, 2
      // Predicated region
      $region37: #{tpu_custom_call.1} parent=5 // pred_check
        %p226 = pneg %p225
      $region38: #{tpu_custom_call.1} parent=5 // pred_check_branch
        %228 = sbr.rel (%p226) target = $region40
      $region39: #{tpu_custom_call.1} parent=5 // pred_region
        // Predicated region
        $region41: #{tpu_custom_call.1} parent=39 // pred_check
          %p229 = pneg %p34
        $region42: #{tpu_custom_call.1} parent=39 // pred_check_branch
          %231 = sbr.rel (%p229) target = $region44
        $region43: #{tpu_custom_call.1} parent=39 // pred_region
          %s232 = smul.u32 7, %s14
          %s233 = ssub.s32 13, %s232
          %p234 = scmp.lt.s32.totalorder %s233, 7
          %s235 = scalar_select %p234, %s233, 7
          %s236 = smul.u32 128, %s235
          %p237 = scmp.lt.s32.totalorder %s232, 12
          %s238 = scalar_select %p237, %s232, 12
          %s239 = smul.addr %s238, 8
          %s240 = scalar_lea.vmem %s0, %s239
          %s241 = smul.u32 7, %s14
          %s242 = ssub.s32 13, %s241
          %p243 = scmp.lt.s32.totalorder %s242, 7
          %s244 = scalar_select %p243, %s242, 7
          %s245 = smul.u32 128, %s244
        $region44: #{tpu_custom_call.1} parent=39 // pred_fallthru
          _
      $region40: #{tpu_custom_call.1} parent=5 // pred_fallthru
        _
      %p246 = scmp.le.s32.totalorder 1, %s14
      %p247 = scmp.lt.s32.totalorder %s14, 3
      %p248 = pnand %p246, %p247
      %p249 = pneg %p248
      // Predicated region
      $region45: #{tpu_custom_call.1} parent=5 // pred_check
        _
      $region46: #{tpu_custom_call.1} parent=5 // pred_check_branch
        %251 = sbr.rel (%p248) target = $region48
      $region47: #{tpu_custom_call.1} parent=5 // pred_region
        %s252 = ssub.s32 %s14, 1
        %s253 = smul.u32 7, %s19
        %s254 = ssub.s32 13, %s253
        %p255 = scmp.lt.s32.totalorder %s254, 7
        %s256 = scalar_select %p255, %s254, 7
        %s257 = smul.u32 128, %s256
        %p258 = scmp.lt.s32.totalorder %s253, 12
        %s259 = scalar_select %p258, %s253, 12
        %s260 = smul.addr %s259, 8
        %s261 = scalar_lea.vmem %s0, %s260
        %p262 = pneg %p40
        %p263 = pneg %p37
        %p264 = pneg %p61
        %p265 = pneg %p58
        %p266 = pneg %p82
        %p267 = pneg %p79
        %p268 = pneg %p103
        %p269 = pneg %p100
        %p270 = pneg %p124
        %p271 = pneg %p121
        %p272 = pneg %p145
        %p273 = pneg %p142
        %p274 = pneg %p166
        %p275 = pneg %p163
        %p276 = pneg %p192
        %p277 = pneg %p189
        %s278 = sand.u32 %s179, 1
        %s279 = sand.u32 %s179, 1
        %s280 = smul.addr %s279, 56
        %s281 = scalar_lea.vmem [#allocation3], %s280
        %s282 = smul.u32 7, %s19
        %s283 = ssub.s32 13, %s282
        %p284 = scmp.lt.s32.totalorder %s283, 7
        %s285 = scalar_select %p284, %s283, 7
        %s286 = smul.u32 128, %s285
        %p287 = scmp.lt.s32.totalorder %s282, 12
        %s288 = scalar_select %p287, %s282, 12
        %s289 = smul.addr %s288, 8
        %s290 = scalar_lea.vmem %s0, %s289
        %s291 = smul.u32 7, %s19
        %s292 = ssub.s32 13, %s291
        %p293 = scmp.lt.s32.totalorder %s292, 7
        %s294 = scalar_select %p293, %s292, 7
        %s295 = smul.u32 128, %s294
        %s296 = smul.u32 7, %s19
        %s297 = ssub.s32 13, %s296
        %p298 = scmp.lt.s32.totalorder %s297, 7
        %s299 = scalar_select %p298, %s297, 7
        %s300 = smul.u32 128, %s299
        %v301 = vld [vmem:[%s290] sm:$0xff]
        %v302 = vld [vmem:[%s290 + $0x8] sm:$0xff]
        %v303 = vld [vmem:[%s290 + $0x10] sm:$0xff]
        %v304 = vld [vmem:[%s290 + $0x18] sm:$0xff]
        %v305 = vld [vmem:[%s290 + $0x20] sm:$0xff]
        %v306 = vld [vmem:[%s290 + $0x28] sm:$0xff]
        %v307 = vld [vmem:[%s290 + $0x30] sm:$0xff]
        %v308 = vld [vmem:[%s1] sm:$0xff]
        %v309 = vld [vmem:[%s1 + $0x8] sm:$0xff]
        %v310 = vld [vmem:[%s2] sm:$0x1]
        %v312 = vlaneseq
        %v313 = vshrl.u32 %v312, 7
        %v314 = vsub.s32 0, %v313
        %v315 = vrot.slane %v310, %v314
        %vm317 = vcmask 130048
        %v319 = vsel %vm317, %v301, 0
        %v322 = vsel %vm317, %v302, 0
        %v325 = vsel %vm317, %v303, 0
        %v328 = vsel %vm317, %v304, 0
        %v331 = vsel %vm317, %v305, 0
        %v334 = vsel %vm317, %v306, 0
        %v337 = vsel %vm317, %v307, 0
        %339 = vmatprep.subr.mxu0 0.0
        %340 = vmatpush1.msra.mxu0 0.0
        %341 = vmatprep.subr.mxu0 0.0
        %342 = vmatpush1.msra.mxu0 0.0
        %343 = vmatprep.subr.mxu0 0.0
        %344 = vmatpush1.msra.mxu0 0.0
        %345 = vmatprep.subr.mxu0 0.0
        %346 = vmatpush1.msra.mxu0 0.0
        %347 = vmatprep.subr.mxu0 0.0
        %348 = vmatpush1.msra.mxu0 0.0
        %349 = vmatprep.subr.mxu0 0.0
        %350 = vmatpush1.msra.mxu0 0.0
        %351 = vmatprep.subr.mxu0 0.0
        %352 = vmatpush1.msra.mxu0 0.0
        %353 = vmatprep.subr.mxu0 0.0
        %354 = vmatpush1.msra.mxu0 0.0
        %355 = vmatprep.subr.mxu0 0.0
        %356 = vmatpush1.msra.mxu0 0.0
        %357 = vmatprep.subr.mxu0 0.0
        %358 = vmatpush1.msra.mxu0 0.0
        %359 = vmatprep.subr.mxu0 0.0
        %360 = vmatpush1.msra.mxu0 0.0
        %361 = vmatprep.subr.mxu0 0.0
        %362 = vmatpush1.msra.mxu0 0.0
        %363 = vmatprep.subr.mxu0 0.0
        %364 = vmatpush1.msra.mxu0 0.0
        %365 = vmatprep.subr.mxu0 0.0
        %366 = vmatpush1.msra.mxu0 0.0
        %367 = vmatprep.subr.mxu0 0.0
        %368 = vmatpush1.msra.mxu0 %v309
        %369 = vmatprep.subr.mxu0 0.0
        %370 = vmatpush1.msra.mxu0 %v308
        %371 = vmatprep.subr.mxu0 0.0
        %372 = vmatpush2.msra.mxu0 0.0
        %373 = vmatprep.subr.mxu0 0.0
        %374 = vmatpush2.msra.mxu0 0.0
        %375 = vmatprep.subr.mxu0 0.0
        %376 = vmatpush2.msra.mxu0 0.0
        %377 = vmatprep.subr.mxu0 0.0
        %378 = vmatpush2.msra.mxu0 0.0
        %379 = vmatprep.subr.mxu0 0.0
        %380 = vmatpush2.msra.mxu0 0.0
        %381 = vmatprep.subr.mxu0 0.0
        %382 = vmatpush2.msra.mxu0 0.0
        %383 = vmatprep.subr.mxu0 0.0
        %384 = vmatpush2.msra.mxu0 0.0
        %385 = vmatprep.subr.mxu0 0.0
        %386 = vmatpush2.msra.mxu0 0.0
        %387 = vmatprep.subr.mxu0 0.0
        %388 = vmatpush2.msra.mxu0 0.0
        %389 = vmatprep.subr.mxu0 0.0
        %390 = vmatpush2.msra.mxu0 0.0
        %391 = vmatprep.subr.mxu0 0.0
        %392 = vmatpush2.msra.mxu0 0.0
        %393 = vmatprep.subr.mxu0 0.0
        %394 = vmatpush2.msra.mxu0 0.0
        %395 = vmatprep.subr.mxu0 0.0
        %396 = vmatpush2.msra.mxu0 0.0
        %397 = vmatprep.subr.mxu0 0.0
        %398 = vmatpush2.msra.mxu0 0.0
        %399 = vmatprep.subr.mxu0 0.0
        %400 = vmatpush2.msra.mxu0 0.0
        %401 = vmatprep.subr.mxu0 0.0
        %402 = vmatpush2.msra.mxu0 0.0
        %403 = vmatprep.mubr.f32.mxu0 0.0
        %404 = vmatmul.mubr.f32.gmra.mxu0 %v319
        %v405 = vpop.f32.mrf.mxu0
        %v406 = vadd.f32 %v315, %v405
        %v407 = vpop.f32.mrf.mxu0
        %408 = vmatprep.mubr.f32.mxu0 0.0
        %409 = vmatmul.mubr.f32.gmra.mxu0 %v322
        %v410 = vpop.f32.mrf.mxu0
        %v411 = vadd.f32 %v315, %v410
        %v412 = vpop.f32.mrf.mxu0
        %413 = vmatprep.mubr.f32.mxu0 0.0
        %414 = vmatmul.mubr.f32.gmra.mxu0 %v325
        %v415 = vpop.f32.mrf.mxu0
        %v416 = vadd.f32 %v315, %v415
        %v417 = vpop.f32.mrf.mxu0
        %418 = vmatprep.mubr.f32.mxu0 0.0
        %419 = vmatmul.mubr.f32.gmra.mxu0 %v328
        %v420 = vpop.f32.mrf.mxu0
        %v421 = vadd.f32 %v315, %v420
        %v422 = vpop.f32.mrf.mxu0
        %423 = vmatprep.mubr.f32.mxu0 0.0
        %424 = vmatmul.mubr.f32.gmra.mxu0 %v331
        %v425 = vpop.f32.mrf.mxu0
        %v426 = vadd.f32 %v315, %v425
        %v427 = vpop.f32.mrf.mxu0
        %428 = vmatprep.mubr.f32.mxu0 0.0
        %429 = vmatmul.mubr.f32.gmra.mxu0 %v334
        %v430 = vpop.f32.mrf.mxu0
        %v431 = vadd.f32 %v315, %v430
        %v432 = vpop.f32.mrf.mxu0
        %433 = vmatprep.mubr.f32.mxu0 0.0
        %434 = vmatmul.mubr.f32.gmra.mxu0 %v337
        %v435 = vpop.f32.mrf.mxu0
        %v436 = vadd.f32 %v315, %v435
        %v437 = vpop.f32.mrf.mxu0
        %438 = vdwg.mxu0
        %v439 = vmax.f32 %v406, 0.0
        %v440 = vmax.f32 %v411, 0.0
        %v441 = vmax.f32 %v416, 0.0
        %v442 = vmax.f32 %v421, 0.0
        %v443 = vmax.f32 %v426, 0.0
        %v444 = vmax.f32 %v431, 0.0
        %v445 = vmax.f32 %v436, 0.0
        %v446 = vld [vmem:[%s3] sm:$0xff]
        %v447 = vld [vmem:[%s3 + $0x8] sm:$0xff]
        %v448 = vld [vmem:[%s3 + $0x10] sm:$0xff]
        %v449 = vld [vmem:[%s3 + $0x18] sm:$0xff]
        %v450 = vld [vmem:[%s4] sm:$0x1]
        %v452 = vlaneseq
        %v453 = vshrl.u32 %v452, 7
        %v454 = vsub.s32 0, %v453
        %v455 = vrot.slane %v450, %v454
        %vm457 = vcmask 261120
        %v459 = vsel %vm457, %v439, 0
        %v462 = vsel %vm457, %v440, 0
        %v465 = vsel %vm457, %v441, 0
        %v468 = vsel %vm457, %v442, 0
        %v471 = vsel %vm457, %v443, 0
        %v474 = vsel %vm457, %v444, 0
        %v477 = vsel %vm457, %v445, 0
        %479 = vmatprep.subr.mxu0 0.0
        %480 = vmatpush1.msra.mxu0 0.0
        %481 = vmatprep.subr.mxu0 0.0
        %482 = vmatpush1.msra.mxu0 0.0
        %483 = vmatprep.subr.mxu0 0.0
        %484 = vmatpush1.msra.mxu0 0.0
        %485 = vmatprep.subr.mxu0 0.0
        %486 = vmatpush1.msra.mxu0 0.0
        %487 = vmatprep.subr.mxu0 0.0
        %488 = vmatpush1.msra.mxu0 0.0
        %489 = vmatprep.subr.mxu0 0.0
        %490 = vmatpush1.msra.mxu0 0.0
        %491 = vmatprep.subr.mxu0 0.0
        %492 = vmatpush1.msra.mxu0 0.0
        %493 = vmatprep.subr.mxu0 0.0
        %494 = vmatpush1.msra.mxu0 0.0
        %495 = vmatprep.subr.mxu0 0.0
        %496 = vmatpush1.msra.mxu0 0.0
        %497 = vmatprep.subr.mxu0 0.0
        %498 = vmatpush1.msra.mxu0 0.0
        %499 = vmatprep.subr.mxu0 0.0
        %500 = vmatpush1.msra.mxu0 0.0
        %501 = vmatprep.subr.mxu0 0.0
        %502 = vmatpush1.msra.mxu0 0.0
        %503 = vmatprep.subr.mxu0 0.0
        %504 = vmatpush1.msra.mxu0 %v449
        %505 = vmatprep.subr.mxu0 0.0
        %506 = vmatpush1.msra.mxu0 %v448
        %507 = vmatprep.subr.mxu0 0.0
        %508 = vmatpush1.msra.mxu0 %v447
        %509 = vmatprep.subr.mxu0 0.0
        %510 = vmatpush1.msra.mxu0 %v446
        %511 = vmatprep.subr.mxu0 0.0
        %512 = vmatpush2.msra.mxu0 0.0
        %513 = vmatprep.subr.mxu0 0.0
        %514 = vmatpush2.msra.mxu0 0.0
        %515 = vmatprep.subr.mxu0 0.0
        %516 = vmatpush2.msra.mxu0 0.0
        %517 = vmatprep.subr.mxu0 0.0
        %518 = vmatpush2.msra.mxu0 0.0
        %519 = vmatprep.subr.mxu0 0.0
        %520 = vmatpush2.msra.mxu0 0.0
        %521 = vmatprep.subr.mxu0 0.0
        %522 = vmatpush2.msra.mxu0 0.0
        %523 = vmatprep.subr.mxu0 0.0
        %524 = vmatpush2.msra.mxu0 0.0
        %525 = vmatprep.subr.mxu0 0.0
        %526 = vmatpush2.msra.mxu0 0.0
        %527 = vmatprep.subr.mxu0 0.0
        %528 = vmatpush2.msra.mxu0 0.0
        %529 = vmatprep.subr.mxu0 0.0
        %530 = vmatpush2.msra.mxu0 0.0
        %531 = vmatprep.subr.mxu0 0.0
        %532 = vmatpush2.msra.mxu0 0.0
        %533 = vmatprep.subr.mxu0 0.0
        %534 = vmatpush2.msra.mxu0 0.0
        %535 = vmatprep.subr.mxu0 0.0
        %536 = vmatpush2.msra.mxu0 0.0
        %537 = vmatprep.subr.mxu0 0.0
        %538 = vmatpush2.msra.mxu0 0.0
        %539 = vmatprep.subr.mxu0 0.0
        %540 = vmatpush2.msra.mxu0 0.0
        %541 = vmatprep.subr.mxu0 0.0
        %542 = vmatpush2.msra.mxu0 0.0
        %543 = vmatprep.mubr.f32.mxu0 0.0
        %544 = vmatmul.mubr.f32.gmra.mxu0 %v459
        %v545 = vpop.f32.mrf.mxu0
        %v546 = vadd.f32 %v455, %v545
        %v547 = vpop.f32.mrf.mxu0
        %548 = vmatprep.mubr.f32.mxu0 0.0
        %549 = vmatmul.mubr.f32.gmra.mxu0 %v462
        %v550 = vpop.f32.mrf.mxu0
        %v551 = vadd.f32 %v455, %v550
        %v552 = vpop.f32.mrf.mxu0
        %553 = vmatprep.mubr.f32.mxu0 0.0
        %554 = vmatmul.mubr.f32.gmra.mxu0 %v465
        %v555 = vpop.f32.mrf.mxu0
        %v556 = vadd.f32 %v455, %v555
        %v557 = vpop.f32.mrf.mxu0
        %558 = vmatprep.mubr.f32.mxu0 0.0
        %559 = vmatmul.mubr.f32.gmra.mxu0 %v468
        %v560 = vpop.f32.mrf.mxu0
        %v561 = vadd.f32 %v455, %v560
        %v562 = vpop.f32.mrf.mxu0
        %563 = vmatprep.mubr.f32.mxu0 0.0
        %564 = vmatmul.mubr.f32.gmra.mxu0 %v471
        %v565 = vpop.f32.mrf.mxu0
        %v566 = vadd.f32 %v455, %v565
        %v567 = vpop.f32.mrf.mxu0
        %568 = vmatprep.mubr.f32.mxu0 0.0
        %569 = vmatmul.mubr.f32.gmra.mxu0 %v474
        %v570 = vpop.f32.mrf.mxu0
        %v571 = vadd.f32 %v455, %v570
        %v572 = vpop.f32.mrf.mxu0
        %573 = vmatprep.mubr.f32.mxu0 0.0
        %574 = vmatmul.mubr.f32.gmra.mxu0 %v477
        %v575 = vpop.f32.mrf.mxu0
        %v576 = vadd.f32 %v455, %v575
        %v577 = vpop.f32.mrf.mxu0
        %578 = vdwg.mxu0
        %v579 = vmax.f32 %v546, 0.0
        %v580 = vmax.f32 %v551, 0.0
        %v581 = vmax.f32 %v556, 0.0
        %v582 = vmax.f32 %v561, 0.0
        %v583 = vmax.f32 %v566, 0.0
        %v584 = vmax.f32 %v571, 0.0
        %v585 = vmax.f32 %v576, 0.0
        %v586 = vld [vmem:[%s5] sm:$0x1]
        %v588 = vlaneseq
        %v589 = vshrl.u32 %v588, 7
        %v590 = vsub.s32 0, %v589
        %v591 = vrot.slane %v586, %v590
        %v593 = vmul.f32 %v579, %v591
        %v594 = vmul.f32 %v580, %v591
        %v595 = vmul.f32 %v581, %v591
        %v596 = vmul.f32 %v582, %v591
        %v597 = vmul.f32 %v583, %v591
        %v598 = vmul.f32 %v584, %v591
        %v599 = vmul.f32 %v585, %v591
        %v600 = vsel %vm317, %v593, 0.0
        %601 = vadd.xlane.f32.xlu0 %v600
        %v602 = vpop.xlane.xlu0 %601
        %v603 = vsel %vm317, %v594, 0.0
        %604 = vadd.xlane.f32.xlu0 %v603
        %v605 = vpop.xlane.xlu0 %604
        %v606 = vsel %vm317, %v595, 0.0
        %607 = vadd.xlane.f32.xlu0 %v606
        %v608 = vpop.xlane.xlu0 %607
        %v609 = vsel %vm317, %v596, 0.0
        %610 = vadd.xlane.f32.xlu0 %v609
        %v611 = vpop.xlane.xlu0 %610
        %v612 = vsel %vm317, %v597, 0.0
        %613 = vadd.xlane.f32.xlu0 %v612
        %v614 = vpop.xlane.xlu0 %613
        %v615 = vsel %vm317, %v598, 0.0
        %616 = vadd.xlane.f32.xlu0 %v615
        %v617 = vpop.xlane.xlu0 %616
        %v618 = vsel %vm317, %v599, 0.0
        %619 = vadd.xlane.f32.xlu0 %v618
        %v620 = vpop.xlane.xlu0 %619
        %s621 = sld [smem:[#allocation2]]
        %v622 = vstv %s621
        %v623 = vadd.f32 %v602, %v622
        %v624 = vadd.f32 %v605, %v622
        %v625 = vadd.f32 %v608, %v622
        %v626 = vadd.f32 %v611, %v622
        %v627 = vadd.f32 %v614, %v622
        %v628 = vadd.f32 %v617, %v622
        %v629 = vadd.f32 %v620, %v622
        %v630 = vand.u32 2147483647, %v623
        %v631 = vand.u32 2147483647, %v624
        %v632 = vand.u32 2147483647, %v625
        %v633 = vand.u32 2147483647, %v626
        %v634 = vand.u32 2147483647, %v627
        %v635 = vand.u32 2147483647, %v628
        %v636 = vand.u32 2147483647, %v629
        %v637 = vsub.f32 0.0, %v630
        %v638 = vsub.f32 0.0, %v631
        %v639 = vsub.f32 0.0, %v632
        %v640 = vsub.f32 0.0, %v633
        %v641 = vsub.f32 0.0, %v634
        %v642 = vsub.f32 0.0, %v635
        %v643 = vsub.f32 0.0, %v636
        %v644 = vmul.f32 %v637, 1.442695
        %v645 = vpow.pop %v644
        %v646 = vmul.f32 %v638, 1.442695
        %v647 = vpow.pop %v646
        %v648 = vmul.f32 %v639, 1.442695
        %v649 = vpow.pop %v648
        %v650 = vmul.f32 %v640, 1.442695
        %v651 = vpow.pop %v650
        %v652 = vmul.f32 %v641, 1.442695
        %v653 = vpow.pop %v652
        %v654 = vmul.f32 %v642, 1.442695
        %v655 = vpow.pop %v654
        %v656 = vmul.f32 %v643, 1.442695
        %v657 = vpow.pop %v656
        %vm658 = vcmp.ge.f32.partialorder %v623, 0.0
        %vm659 = vcmp.ge.f32.partialorder %v624, 0.0
        %vm660 = vcmp.ge.f32.partialorder %v625, 0.0
        %vm661 = vcmp.ge.f32.partialorder %v626, 0.0
        %vm662 = vcmp.ge.f32.partialorder %v627, 0.0
        %vm663 = vcmp.ge.f32.partialorder %v628, 0.0
        %vm664 = vcmp.ge.f32.partialorder %v629, 0.0
        %v665 = vsel %vm658, 1.0, %v645
        %v666 = vsel %vm659, 1.0, %v647
        %v667 = vsel %vm660, 1.0, %v649
        %v668 = vsel %vm661, 1.0, %v651
        %v669 = vsel %vm662, 1.0, %v653
        %v670 = vsel %vm663, 1.0, %v655
        %v671 = vsel %vm664, 1.0, %v657
        %v672 = vadd.f32 %v645, 1.0
        %v673 = vadd.f32 %v647, 1.0
        %v674 = vadd.f32 %v649, 1.0
        %v675 = vadd.f32 %v651, 1.0
        %v676 = vadd.f32 %v653, 1.0
        %v677 = vadd.f32 %v655, 1.0
        %v678 = vadd.f32 %v657, 1.0
        %v679 = vrcp.pop %v672
        %v680 = vrcp.pop %v673
        %v681 = vrcp.pop %v674
        %v682 = vrcp.pop %v675
        %v683 = vrcp.pop %v676
        %v684 = vrcp.pop %v677
        %v685 = vrcp.pop %v678
        %v686 = vmul.f32 %v665, %v679
        %v687 = vmul.f32 %v666, %v680
        %v688 = vmul.f32 %v667, %v681
        %v689 = vmul.f32 %v668, %v682
        %v690 = vmul.f32 %v669, %v683
        %v691 = vmul.f32 %v670, %v684
        %v692 = vmul.f32 %v671, %v685
        %vm693 = vcmask 7168
        %694 = vst.msk [vmem:[%s281] sm:$0xff] %vm693, %v686
        %695 = vst.msk [vmem:[%s281 + $0x8] sm:$0xff] %vm693, %v687
        %696 = vst.msk [vmem:[%s281 + $0x10] sm:$0xff] %vm693, %v688
        %697 = vst.msk [vmem:[%s281 + $0x18] sm:$0xff] %vm693, %v689
        %698 = vst.msk [vmem:[%s281 + $0x20] sm:$0xff] %vm693, %v690
        %699 = vst.msk [vmem:[%s281 + $0x28] sm:$0xff] %vm693, %v691
        %700 = vst.msk [vmem:[%s281 + $0x30] sm:$0xff] %vm693, %v692
        %s701 = sand.u32 %s179, 1
        %s702 = sand.u32 %s179, 1
        %s703 = smul.addr %s702, 56
        %s704 = scalar_lea.vmem [#allocation3], %s703
        // Predicated region
        $region49: #{tpu_custom_call.1} parent=47 // pred_check
          %p705 = pneg %p189
        $region50: #{tpu_custom_call.1} parent=47 // pred_check_branch
          %707 = sbr.rel (%p705) target = $region52
        $region51: #{tpu_custom_call.1} parent=47 // pred_region
          %s708 = smul.u32 7, %s19
          %s709 = ssub.s32 13, %s708
          %p710 = scmp.lt.s32.totalorder %s709, 7
          %s711 = scalar_select %p710, %s709, 7
          %s712 = smul.u32 128, %s711
          %p713 = scmp.ne.s32.totalorder 0, %s712
          %s714 = smul.addr %s708, 8
          %s715 = scalar_lea.vmem %s7, %s714
          // Predicated region
          $region53: #{tpu_custom_call.1} parent=51 // pred_check
            %p716 = pneg %p713
          $region54: #{tpu_custom_call.1} parent=51 // pred_check_branch
            %718 = sbr.rel (%p716) target = $region56
          $region55: #{tpu_custom_call.1} parent=51 // pred_region
            // Predicated region
            $region57: #{tpu_custom_call.1} parent=55 // pred_check
              _
            $region58: #{tpu_custom_call.1} parent=55 // pred_check_branch
              %720 = sbr.rel (0) target = $region60
            $region59: #{tpu_custom_call.1} parent=55 // pred_region
              // Predicated region
              $region79: #{tpu_custom_call.1} parent=59 // pred_check
                _
              $region80: #{tpu_custom_call.1} parent=59 // pred_check_branch
                %783 = sbr.rel (0) target = $region82
              $region81: #{tpu_custom_call.1} parent=59 // pred_region
                %s784 = sdiv.u32.pop %s711, 7
                %s785 = srem.u32.pop %s711, 7
                // While loop
                $region83: #{tpu_custom_call.1} parent=81 // loop_pre_header
                  _
                $region84: #{tpu_custom_call.1} parent=81 // loop_header
                  %s787 = sphi 0, %s789
                  %p788 = scmp.ge.s32.totalorder %s787, %s784
                  %s792 = sphi 0, %s811
                  %s793 = sphi %s704, %s814
                  %s794 = sphi %s715, %s815
                $region85: #{tpu_custom_call.1} parent=81 // loop_header_branch
                  %791 = sbr.rel (%p788) target = $region89
                $region86: #{tpu_custom_call.1} parent=81 // loop_body
                  %v795 = vld [vmem:[%s793] sm:$0xff]
                  %796 = vst [vmem:[%s794] sm:$0xff] %v795
                  %v797 = vld [vmem:[%s793 + $0x8] sm:$0xff]
                  %798 = vst [vmem:[%s794 + $0x8] sm:$0xff] %v797
                  %v799 = vld [vmem:[%s793 + $0x10] sm:$0xff]
                  %800 = vst [vmem:[%s794 + $0x10] sm:$0xff] %v799
                  %v801 = vld [vmem:[%s793 + $0x18] sm:$0xff]
                  %802 = vst [vmem:[%s794 + $0x18] sm:$0xff] %v801
                  %v803 = vld [vmem:[%s793 + $0x20] sm:$0xff]
                  %804 = vst [vmem:[%s794 + $0x20] sm:$0xff] %v803
                  %v805 = vld [vmem:[%s793 + $0x28] sm:$0xff]
                  %806 = vst [vmem:[%s794 + $0x28] sm:$0xff] %v805
                  %v807 = vld [vmem:[%s793 + $0x30] sm:$0xff]
                  %808 = vst [vmem:[%s794 + $0x30] sm:$0xff] %v807
                  %s809 = sadd.s32 1, %s792
                  %p810 = scmp.ge.s32.totalorder %s809, %s784
                  %s811 = scalar_select %p810, 0, %s809
                  %s812 = smul.u32 %s811, 56
                  %s813 = smul.u32 %s811, 56
                  %s814 = scalar_lea.vmem %s704, %s812 [#allocation3]
                  %s815 = scalar_lea.vmem %s715, %s813
                $region87: #{tpu_custom_call.1} parent=81 // loop_footer
                  %s789 = sadd.s32 %s787, 1
                $region88: #{tpu_custom_call.1} parent=81 // loop_footer_branch
                  %786 = sbr.rel target = $region84
                $region89: #{tpu_custom_call.1} parent=81 // loop_exit
                  _
                %s816 = sdiv.u32.pop %s711, 7
                %s817 = srem.u32.pop %s711, 7
                %s818 = smul.u32 %s816, 7
                %s819 = smul.u32 8, %s818
                %s820 = scalar_lea.vmem %s704, %s819 [#allocation3]
                %s821 = smul.u32 8, %s818
                %s822 = scalar_lea.vmem %s715, %s821
                // While loop
                $region90: #{tpu_custom_call.1} parent=81 // loop_pre_header
                  _
                $region91: #{tpu_custom_call.1} parent=81 // loop_header
                  %s824 = sphi 0, %s826
                  %p825 = scmp.ge.s32.totalorder %s824, %s817
                  %s829 = sphi 0, %s836
                  %s830 = sphi %s820, %s839
                  %s831 = sphi %s822, %s840
                $region92: #{tpu_custom_call.1} parent=81 // loop_header_branch
                  %828 = sbr.rel (%p825) target = $region96
                $region93: #{tpu_custom_call.1} parent=81 // loop_body
                  %v832 = vld [vmem:[%s830] sm:$0xff]
                  %833 = vst [vmem:[%s831] sm:$0xff] %v832
                  %s834 = sadd.s32 1, %s829
                  %p835 = scmp.ge.s32.totalorder %s834, %s817
                  %s836 = scalar_select %p835, 0, %s834
                  %s837 = smul.u32 %s836, 8
                  %s838 = smul.u32 %s836, 8
                  %s839 = scalar_lea.vmem %s820, %s837 [#allocation3]
                  %s840 = scalar_lea.vmem %s822, %s838
                $region94: #{tpu_custom_call.1} parent=81 // loop_footer
                  %s826 = sadd.s32 %s824, 1
                $region95: #{tpu_custom_call.1} parent=81 // loop_footer_branch
                  %823 = sbr.rel target = $region91
                $region96: #{tpu_custom_call.1} parent=81 // loop_exit
                  _
              $region82: #{tpu_custom_call.1} parent=59 // pred_fallthru
                _
              // Predicated region
              $region97: #{tpu_custom_call.1} parent=59 // pred_check
                _
              $region98: #{tpu_custom_call.1} parent=59 // pred_check_branch
                %842 = sbr.rel target = $region100
              $region99: #{tpu_custom_call.1} parent=59 // pred_region
                _
              $region100: #{tpu_custom_call.1} parent=59 // pred_fallthru
                _
            $region60: #{tpu_custom_call.1} parent=55 // pred_fallthru
              _
            // Predicated region
            $region61: #{tpu_custom_call.1} parent=55 // pred_check
              _
            $region62: #{tpu_custom_call.1} parent=55 // pred_check_branch
              %722 = sbr.rel target = $region64
            $region63: #{tpu_custom_call.1} parent=55 // pred_region
              %s724 = ssub.s32 256, 1
              %s725 = sdiv.u32.pop %s711, 7
              %s726 = srem.u32.pop %s711, 7
              // While loop
              $region65: #{tpu_custom_call.1} parent=63 // loop_pre_header
                _
              $region66: #{tpu_custom_call.1} parent=63 // loop_header
                %s728 = sphi 0, %s730
                %p729 = scmp.ge.s32.totalorder %s728, %s725
                %s733 = sphi 0, %s752
                %s734 = sphi %s704, %s755
                %s735 = sphi %s715, %s756
              $region67: #{tpu_custom_call.1} parent=63 // loop_header_branch
                %732 = sbr.rel (%p729) target = $region71
              $region68: #{tpu_custom_call.1} parent=63 // loop_body
                %v736 = vld [vmem:[%s734] sm:%s724]
                %737 = vst [vmem:[%s735] sm:%s724] %v736
                %v738 = vld [vmem:[%s734 + $0x8] sm:%s724]
                %739 = vst [vmem:[%s735 + $0x8] sm:%s724] %v738
                %v740 = vld [vmem:[%s734 + $0x10] sm:%s724]
                %741 = vst [vmem:[%s735 + $0x10] sm:%s724] %v740
                %v742 = vld [vmem:[%s734 + $0x18] sm:%s724]
                %743 = vst [vmem:[%s735 + $0x18] sm:%s724] %v742
                %v744 = vld [vmem:[%s734 + $0x20] sm:%s724]
                %745 = vst [vmem:[%s735 + $0x20] sm:%s724] %v744
                %v746 = vld [vmem:[%s734 + $0x28] sm:%s724]
                %747 = vst [vmem:[%s735 + $0x28] sm:%s724] %v746
                %v748 = vld [vmem:[%s734 + $0x30] sm:%s724]
                %749 = vst [vmem:[%s735 + $0x30] sm:%s724] %v748
                %s750 = sadd.s32 1, %s733
                %p751 = scmp.ge.s32.totalorder %s750, %s725
                %s752 = scalar_select %p751, 0, %s750
                %s753 = smul.u32 %s752, 56
                %s754 = smul.u32 %s752, 56
                %s755 = scalar_lea.vmem %s704, %s753 [#allocation3]
                %s756 = scalar_lea.vmem %s715, %s754
              $region69: #{tpu_custom_call.1} parent=63 // loop_footer
                %s730 = sadd.s32 %s728, 1
              $region70: #{tpu_custom_call.1} parent=63 // loop_footer_branch
                %727 = sbr.rel target = $region66
              $region71: #{tpu_custom_call.1} parent=63 // loop_exit
                _
              %s757 = sdiv.u32.pop %s711, 7
              %s758 = srem.u32.pop %s711, 7
              %s759 = smul.u32 %s757, 7
              %s760 = smul.u32 8, %s759
              %s761 = scalar_lea.vmem %s704, %s760 [#allocation3]
              %s762 = smul.u32 8, %s759
              %s763 = scalar_lea.vmem %s715, %s762
              // While loop
              $region72: #{tpu_custom_call.1} parent=63 // loop_pre_header
                _
              $region73: #{tpu_custom_call.1} parent=63 // loop_header
                %s765 = sphi 0, %s767
                %p766 = scmp.ge.s32.totalorder %s765, %s758
                %s770 = sphi 0, %s777
                %s771 = sphi %s761, %s780
                %s772 = sphi %s763, %s781
              $region74: #{tpu_custom_call.1} parent=63 // loop_header_branch
                %769 = sbr.rel (%p766) target = $region78
              $region75: #{tpu_custom_call.1} parent=63 // loop_body
                %v773 = vld [vmem:[%s771] sm:%s724]
                %774 = vst [vmem:[%s772] sm:%s724] %v773
                %s775 = sadd.s32 1, %s770
                %p776 = scmp.ge.s32.totalorder %s775, %s758
                %s777 = scalar_select %p776, 0, %s775
                %s778 = smul.u32 %s777, 8
                %s779 = smul.u32 %s777, 8
                %s780 = scalar_lea.vmem %s761, %s778 [#allocation3]
                %s781 = scalar_lea.vmem %s763, %s779
              $region76: #{tpu_custom_call.1} parent=63 // loop_footer
                %s767 = sadd.s32 %s765, 1
              $region77: #{tpu_custom_call.1} parent=63 // loop_footer_branch
                %764 = sbr.rel target = $region73
              $region78: #{tpu_custom_call.1} parent=63 // loop_exit
                _
            $region64: #{tpu_custom_call.1} parent=55 // pred_fallthru
              _
          $region56: #{tpu_custom_call.1} parent=51 // pred_fallthru
            _
          %843 = vnop
        $region52: #{tpu_custom_call.1} parent=47 // pred_fallthru
          _
      $region48: #{tpu_custom_call.1} parent=5 // pred_fallthru
        _
      %p844 = scmp.le.s32.totalorder 2, %s14
      // Predicated region
      $region101: #{tpu_custom_call.1} parent=5 // pred_check
        %p845 = pneg %p844
      $region102: #{tpu_custom_call.1} parent=5 // pred_check_branch
        %847 = sbr.rel (%p845) target = $region104
      $region103: #{tpu_custom_call.1} parent=5 // pred_region
        %s848 = ssub.s32 %s14, 2
        // Predicated region
        $region105: #{tpu_custom_call.1} parent=103 // pred_check
          %p849 = pneg %p195
        $region106: #{tpu_custom_call.1} parent=103 // pred_check_branch
          %851 = sbr.rel (%p849) target = $region108
        $region107: #{tpu_custom_call.1} parent=103 // pred_region
          %s852 = sand.u32 %s180, 1
          %s853 = sand.u32 %s180, 1
          %s854 = smul.addr %s853, 56
          %s855 = scalar_lea.vmem [#allocation3], %s854
        $region108: #{tpu_custom_call.1} parent=103 // pred_fallthru
          _
      $region104: #{tpu_custom_call.1} parent=5 // pred_fallthru
        _
    $region6: #{tpu_custom_call.1} parent=1 // loop_footer
      %s18 = sadd.s32 1, %s14
    $region7: #{tpu_custom_call.1} parent=1 // loop_footer_branch
      %13 = sbr.rel target = $region3
    $region8: #{tpu_custom_call.1} parent=1 // loop_exit
      _

// kernel: tpu_custom_call.1
$region0: #{tpu_custom_call.1}
  #allocation0 [shape = 'u32[]', space=smem, size = 0x4, offset = 0x4, fixed_abs, tag = 'smem constant byte address 0x4 - core index']
  #allocation1 [shape = 'u32[144,128]{1,0:T(1,128)}', space=vmem, size = 0x12000, scoped, tag = 'internal scratch']
  #allocation2 [shape = 'f32[1,1]{1,0:T(1,128)S(6)}', space=smem, size = 0x200, scoped, tag = 'scoped memory for tpu_custom_call.1']
  %s0 = inlined_call_operand.vmem [shape: f32[100,16], index: 0, kind: input, shape index: {}]
  %s1 = inlined_call_operand.vmem [shape: f32[16,32], index: 1, kind: input, shape index: {}]
  %s2 = inlined_call_operand.vmem [shape: f32[1,32], index: 2, kind: input, shape index: {}]
  %s3 = inlined_call_operand.vmem [shape: f32[32,16], index: 3, kind: input, shape index: {}]
  %s4 = inlined_call_operand.vmem [shape: f32[1,16], index: 4, kind: input, shape index: {}]
  %s5 = inlined_call_operand.vmem [shape: f32[1,16], index: 5, kind: input, shape index: {}]
  %s6 = inlined_call_operand.<no memory space> [shape: f32[1,1], index: 6, kind: input, shape index: {}]
  %s7 = inlined_call_operand.vmem [shape: f32[100,1], index: 7, kind: output, shape index: {}]
  %s8 = sld [smem:[#allocation0]]
  $region109: #{tpu_custom_call.1} parent=0
    _
  %s10 = ssub.s32 1, %s8
  %s11 = scalar_select 0, %s10, %s8
  %12 = sst [smem:[#allocation2]] %s6
  $region1: #{tpu_custom_call.1} parent=0
    #allocation3 [shape = 'u8[57344]{0}', space=vmem, size = 0xe000, scoped, tag = 'output window, operand 0']
    loop: start=0, step=1, limit=4
    $region2: #{tpu_custom_call.1} parent=1 // loop_pre_header
      _
    $region3: #{tpu_custom_call.1} parent=1 // loop_header
      %s14 = sphi 0, %s18
      %p15 = scmp.ge.s32.totalorder %s14, 4
      %s24 = sphi 0, %s26
      %s27 = sphi 0, %s24
      %s28 = sphi 0, %s27
      %s44 = sphi 0, %s28
      %s48 = sphi 0, %s48
      %s50 = sphi 0, %s48
      %s51 = sphi 0, %s50
      %s65 = sphi 0, %s51
      %s69 = sphi 0, %s69
      %s71 = sphi 0, %s69
      %s72 = sphi 0, %s71
      %s86 = sphi 0, %s72
      %s90 = sphi 0, %s90
      %s92 = sphi 0, %s90
      %s93 = sphi 0, %s92
      %s107 = sphi 0, %s93
      %s111 = sphi 0, %s111
      %s113 = sphi 0, %s111
      %s114 = sphi 0, %s113
      %s128 = sphi 0, %s114
      %s132 = sphi 0, %s132
      %s134 = sphi 0, %s132
      %s135 = sphi 0, %s134
      %s149 = sphi 0, %s135
      %s153 = sphi 0, %s153
      %s155 = sphi 0, %s153
      %s156 = sphi 0, %s155
      %s170 = sphi 0, %s156
      %s176 = sphi 0, %s178
      %s179 = sphi 0, %s176
      %s180 = sphi 0, %s179
      %s196 = sphi 0, %s180
    $region4: #{tpu_custom_call.1} parent=1 // loop_header_branch
      %17 = sbr.rel (%p15) target = $region8
    $region5: #{tpu_custom_call.1} parent=1 // loop_body
      %s19 = ssub.s32 %s14, 1
      %s20 = ssub.s32 %s14, 2
      %s21 = sadd.s32 %s14, 1
      %s22 = ssub.s32 %s14, %s21
      %p23 = scmp.eq.s32.totalorder %s22, 0
      %s25 = sadd.s32 %s24, 1
      %s26 = scalar_select %p23, %s24, %s25
      %p29 = pneg %p23
      %p30 = scmp.eq.s32.totalorder %s14, 1
      %p31 = por %p29, %p30
      %p32 = scmp.ne.s32.totalorder %s24, %s27
      %p33 = scmp.eq.s32.totalorder %s14, 0
      %p34 = por %p32, %p33
      %p35 = scmp.ne.s32.totalorder %s24, %s27
      %p36 = scmp.eq.s32.totalorder %s19, 1
      %p37 = por %p35, %p36
      %p38 = scmp.ne.s32.totalorder %s27, %s28
      %p39 = scmp.eq.s32.totalorder %s19, 0
      %p40 = por %p38, %p39
      %p41 = scmp.ne.s32.totalorder %s27, %s28
      %p42 = scmp.eq.s32.totalorder %s20, 1
      %p43 = por %p41, %p42
      %p45 = scmp.ne.s32.totalorder %s28, %s44
      %p46 = scmp.eq.s32.totalorder %s20, 0
      %p47 = por %p45, %p46
      %s49 = sadd.s32 %s48, 1
      %p52 = scmp.eq.s32.totalorder %s14, 1
      %p53 = scmp.ne.s32.totalorder %s48, %s50
      %p54 = scmp.eq.s32.totalorder %s14, 0
      %p55 = por %p53, %p54
      %p56 = scmp.ne.s32.totalorder %s48, %s50
      %p57 = scmp.eq.s32.totalorder %s19, 1
      %p58 = por %p56, %p57
      %p59 = scmp.ne.s32.totalorder %s50, %s51
      %p60 = scmp.eq.s32.totalorder %s19, 0
      %p61 = por %p59, %p60
      %p62 = scmp.ne.s32.totalorder %s50, %s51
      %p63 = scmp.eq.s32.totalorder %s20, 1
      %p64 = por %p62, %p63
      %p66 = scmp.ne.s32.totalorder %s51, %s65
      %p67 = scmp.eq.s32.totalorder %s20, 0
      %p68 = por %p66, %p67
      %s70 = sadd.s32 %s69, 1
      %p73 = scmp.eq.s32.totalorder %s14, 1
      %p74 = scmp.ne.s32.totalorder %s69, %s71
      %p75 = scmp.eq.s32.totalorder %s14, 0
      %p76 = por %p74, %p75
      %p77 = scmp.ne.s32.totalorder %s69, %s71
      %p78 = scmp.eq.s32.totalorder %s19, 1
      %p79 = por %p77, %p78
      %p80 = scmp.ne.s32.totalorder %s71, %s72
      %p81 = scmp.eq.s32.totalorder %s19, 0
      %p82 = por %p80, %p81
      %p83 = scmp.ne.s32.totalorder %s71, %s72
      %p84 = scmp.eq.s32.totalorder %s20, 1
      %p85 = por %p83, %p84
      %p87 = scmp.ne.s32.totalorder %s72, %s86
      %p88 = scmp.eq.s32.totalorder %s20, 0
      %p89 = por %p87, %p88
      %s91 = sadd.s32 %s90, 1
      %p94 = scmp.eq.s32.totalorder %s14, 1
      %p95 = scmp.ne.s32.totalorder %s90, %s92
      %p96 = scmp.eq.s32.totalorder %s14, 0
      %p97 = por %p95, %p96
      %p98 = scmp.ne.s32.totalorder %s90, %s92
      %p99 = scmp.eq.s32.totalorder %s19, 1
      %p100 = por %p98, %p99
      %p101 = scmp.ne.s32.totalorder %s92, %s93
      %p102 = scmp.eq.s32.totalorder %s19, 0
      %p103 = por %p101, %p102
      %p104 = scmp.ne.s32.totalorder %s92, %s93
      %p105 = scmp.eq.s32.totalorder %s20, 1
      %p106 = por %p104, %p105
      %p108 = scmp.ne.s32.totalorder %s93, %s107
      %p109 = scmp.eq.s32.totalorder %s20, 0
      %p110 = por %p108, %p109
      %s112 = sadd.s32 %s111, 1
      %p115 = scmp.eq.s32.totalorder %s14, 1
      %p116 = scmp.ne.s32.totalorder %s111, %s113
      %p117 = scmp.eq.s32.totalorder %s14, 0
      %p118 = por %p116, %p117
      %p119 = scmp.ne.s32.totalorder %s111, %s113
      %p120 = scmp.eq.s32.totalorder %s19, 1
      %p121 = por %p119, %p120
      %p122 = scmp.ne.s32.totalorder %s113, %s114
      %p123 = scmp.eq.s32.totalorder %s19, 0
      %p124 = por %p122, %p123
      %p125 = scmp.ne.s32.totalorder %s113, %s114
      %p126 = scmp.eq.s32.totalorder %s20, 1
      %p127 = por %p125, %p126
      %p129 = scmp.ne.s32.totalorder %s114, %s128
      %p130 = scmp.eq.s32.totalorder %s20, 0
      %p131 = por %p129, %p130
      %s133 = sadd.s32 %s132, 1
      %p136 = scmp.eq.s32.totalorder %s14, 1
      %p137 = scmp.ne.s32.totalorder %s132, %s134
      %p138 = scmp.eq.s32.totalorder %s14, 0
      %p139 = por %p137, %p138
      %p140 = scmp.ne.s32.totalorder %s132, %s134
      %p141 = scmp.eq.s32.totalorder %s19, 1
      %p142 = por %p140, %p141
      %p143 = scmp.ne.s32.totalorder %s134, %s135
      %p144 = scmp.eq.s32.totalorder %s19, 0
      %p145 = por %p143, %p144
      %p146 = scmp.ne.s32.totalorder %s134, %s135
      %p147 = scmp.eq.s32.totalorder %s20, 1
      %p148 = por %p146, %p147
      %p150 = scmp.ne.s32.totalorder %s135, %s149
      %p151 = scmp.eq.s32.totalorder %s20, 0
      %p152 = por %p150, %p151
      %s154 = sadd.s32 %s153, 1
      %p157 = scmp.eq.s32.totalorder %s14, 1
      %p158 = scmp.ne.s32.totalorder %s153, %s155
      %p159 = scmp.eq.s32.totalorder %s14, 0
      %p160 = por %p158, %p159
      %p161 = scmp.ne.s32.totalorder %s153, %s155
      %p162 = scmp.eq.s32.totalorder %s19, 1
      %p163 = por %p161, %p162
      %p164 = scmp.ne.s32.totalorder %s155, %s156
      %p165 = scmp.eq.s32.totalorder %s19, 0
      %p166 = por %p164, %p165
      %p167 = scmp.ne.s32.totalorder %s155, %s156
      %p168 = scmp.eq.s32.totalorder %s20, 1
      %p169 = por %p167, %p168
      %p171 = scmp.ne.s32.totalorder %s156, %s170
      %p172 = scmp.eq.s32.totalorder %s20, 0
      %p173 = por %p171, %p172
      %s174 = ssub.s32 %s14, %s21
      %p175 = scmp.eq.s32.totalorder %s174, 0
      %s177 = sadd.s32 %s176, 1
      %s178 = scalar_select %p175, %s176, %s177
      %p181 = pneg %p175
      %p182 = scmp.eq.s32.totalorder %s14, 1
      %p183 = por %p181, %p182
      %p184 = scmp.ne.s32.totalorder %s176, %s179
      %p185 = scmp.eq.s32.totalorder %s14, 0
      %p186 = por %p184, %p185
      %p187 = scmp.ne.s32.totalorder %s176, %s179
      %p188 = scmp.eq.s32.totalorder %s19, 1
      %p189 = por %p187, %p188
      %p190 = scmp.ne.s32.totalorder %s179, %s180
      %p191 = scmp.eq.s32.totalorder %s19, 0
      %p192 = por %p190, %p191
      %p193 = scmp.ne.s32.totalorder %s179, %s180
      %p194 = scmp.eq.s32.totalorder %s20, 1
      %p195 = por %p193, %p194
      %p197 = scmp.ne.s32.totalorder %s180, %s196
      %p198 = scmp.eq.s32.totalorder %s20, 0
      %p199 = por %p197, %p198
      %p200 = scmp.le.s32.totalorder 1, %s14
      %p201 = scmp.lt.s32.totalorder %s14, 3
      %p202 = pnand %p200, %p201
      %p203 = pneg %p202
      // Predicated region
      $region9: #{tpu_custom_call.1} parent=5 // pred_check
        _
      $region10: #{tpu_custom_call.1} parent=5 // pred_check_branch
        %205 = sbr.rel (%p202) target = $region12
      $region11: #{tpu_custom_call.1} parent=5 // pred_region
        %s206 = ssub.s32 %s14, 1
        // Predicated region
        $region13: #{tpu_custom_call.1} parent=11 // pred_check
          %p207 = pneg %p61
        $region14: #{tpu_custom_call.1} parent=11 // pred_check_branch
          %209 = sbr.rel (%p207) target = $region16
        $region15: #{tpu_custom_call.1} parent=11 // pred_region
          _
        $region16: #{tpu_custom_call.1} parent=11 // pred_fallthru
          _
        // Predicated region
        $region17: #{tpu_custom_call.1} parent=11 // pred_check
          %p210 = pneg %p82
        $region18: #{tpu_custom_call.1} parent=11 // pred_check_branch
          %212 = sbr.rel (%p210) target = $region20
        $region19: #{tpu_custom_call.1} parent=11 // pred_region
          _
        $region20: #{tpu_custom_call.1} parent=11 // pred_fallthru
          _
        // Predicated region
        $region21: #{tpu_custom_call.1} parent=11 // pred_check
          %p213 = pneg %p103
        $region22: #{tpu_custom_call.1} parent=11 // pred_check_branch
          %215 = sbr.rel (%p213) target = $region24
        $region23: #{tpu_custom_call.1} parent=11 // pred_region
          _
        $region24: #{tpu_custom_call.1} parent=11 // pred_fallthru
          _
        // Predicated region
        $region25: #{tpu_custom_call.1} parent=11 // pred_check
          %p216 = pneg %p124
        $region26: #{tpu_custom_call.1} parent=11 // pred_check_branch
          %218 = sbr.rel (%p216) target = $region28
        $region27: #{tpu_custom_call.1} parent=11 // pred_region
          _
        $region28: #{tpu_custom_call.1} parent=11 // pred_fallthru
          _
        // Predicated region
        $region29: #{tpu_custom_call.1} parent=11 // pred_check
          %p219 = pneg %p145
        $region30: #{tpu_custom_call.1} parent=11 // pred_check_branch
          %221 = sbr.rel (%p219) target = $region32
        $region31: #{tpu_custom_call.1} parent=11 // pred_region
          _
        $region32: #{tpu_custom_call.1} parent=11 // pred_fallthru
          _
        // Predicated region
        $region33: #{tpu_custom_call.1} parent=11 // pred_check
          %p222 = pneg %p166
        $region34: #{tpu_custom_call.1} parent=11 // pred_check_branch
          %224 = sbr.rel (%p222) target = $region36
        $region35: #{tpu_custom_call.1} parent=11 // pred_region
          _
        $region36: #{tpu_custom_call.1} parent=11 // pred_fallthru
          _
      $region12: #{tpu_custom_call.1} parent=5 // pred_fallthru
        _
      %p225 = scmp.lt.s32.totalorder %s14, 2
      // Predicated region
      $region37: #{tpu_custom_call.1} parent=5 // pred_check
        %p226 = pneg %p225
      $region38: #{tpu_custom_call.1} parent=5 // pred_check_branch
        %228 = sbr.rel (%p226) target = $region40
      $region39: #{tpu_custom_call.1} parent=5 // pred_region
        // Predicated region
        $region41: #{tpu_custom_call.1} parent=39 // pred_check
          %p229 = pneg %p34
        $region42: #{tpu_custom_call.1} parent=39 // pred_check_branch
          %231 = sbr.rel (%p229) target = $region44
        $region43: #{tpu_custom_call.1} parent=39 // pred_region
          %s232 = smul.u32 7, %s14
          %s233 = ssub.s32 13, %s232
          %p234 = scmp.lt.s32.totalorder %s233, 7
          %s235 = scalar_select %p234, %s233, 7
          %s236 = smul.u32 128, %s235
          %p237 = scmp.lt.s32.totalorder %s232, 12
          %s238 = scalar_select %p237, %s232, 12
          %s239 = smul.addr %s238, 8
          %s240 = scalar_lea.vmem %s0, %s239
          %s241 = smul.u32 7, %s14
          %s242 = ssub.s32 13, %s241
          %p243 = scmp.lt.s32.totalorder %s242, 7
          %s244 = scalar_select %p243, %s242, 7
          %s245 = smul.u32 128, %s244
        $region44: #{tpu_custom_call.1} parent=39 // pred_fallthru
          _
      $region40: #{tpu_custom_call.1} parent=5 // pred_fallthru
        _
      %p246 = scmp.le.s32.totalorder 1, %s14
      %p247 = scmp.lt.s32.totalorder %s14, 3
      %p248 = pnand %p246, %p247
      %p249 = pneg %p248
      // Predicated region
      $region45: #{tpu_custom_call.1} parent=5 // pred_check
        _
      $region46: #{tpu_custom_call.1} parent=5 // pred_check_branch
        %251 = sbr.rel (%p248) target = $region48
      $region47: #{tpu_custom_call.1} parent=5 // pred_region
        %s252 = ssub.s32 %s14, 1
        %s253 = smul.u32 7, %s19
        %s254 = ssub.s32 13, %s253
        %p255 = scmp.lt.s32.totalorder %s254, 7
        %s256 = scalar_select %p255, %s254, 7
        %s257 = smul.u32 128, %s256
        %p258 = scmp.lt.s32.totalorder %s253, 12
        %s259 = scalar_select %p258, %s253, 12
        %s260 = smul.addr %s259, 8
        %s261 = scalar_lea.vmem %s0, %s260
        %p262 = pneg %p40
        %p263 = pneg %p37
        %p264 = pneg %p61
        %p265 = pneg %p58
        %p266 = pneg %p82
        %p267 = pneg %p79
        %p268 = pneg %p103
        %p269 = pneg %p100
        %p270 = pneg %p124
        %p271 = pneg %p121
        %p272 = pneg %p145
        %p273 = pneg %p142
        %p274 = pneg %p166
        %p275 = pneg %p163
        %p276 = pneg %p192
        %p277 = pneg %p189
        %s278 = sand.u32 %s179, 1
        %s279 = sand.u32 %s179, 1
        %s280 = smul.addr %s279, 56
        %s281 = scalar_lea.vmem [#allocation3], %s280
        %s282 = smul.u32 7, %s19
        %s283 = ssub.s32 13, %s282
        %p284 = scmp.lt.s32.totalorder %s283, 7
        %s285 = scalar_select %p284, %s283, 7
        %s286 = smul.u32 128, %s285
        %p287 = scmp.lt.s32.totalorder %s282, 12
        %s288 = scalar_select %p287, %s282, 12
        %s289 = smul.addr %s288, 8
        %s290 = scalar_lea.vmem %s0, %s289
        %s291 = smul.u32 7, %s19
        %s292 = ssub.s32 13, %s291
        %p293 = scmp.lt.s32.totalorder %s292, 7
        %s294 = scalar_select %p293, %s292, 7
        %s295 = smul.u32 128, %s294
        %s296 = smul.u32 7, %s19
        %s297 = ssub.s32 13, %s296
        %p298 = scmp.lt.s32.totalorder %s297, 7
        %s299 = scalar_select %p298, %s297, 7
        %s300 = smul.u32 128, %s299
        %v301 = vld [vmem:[%s290] sm:$0xff]
        %v302 = vld [vmem:[%s290 + $0x8] sm:$0xff]
        %v303 = vld [vmem:[%s290 + $0x10] sm:$0xff]
        %v304 = vld [vmem:[%s290 + $0x18] sm:$0xff]
        %v305 = vld [vmem:[%s290 + $0x20] sm:$0xff]
        %v306 = vld [vmem:[%s290 + $0x28] sm:$0xff]
        %v307 = vld [vmem:[%s290 + $0x30] sm:$0xff]
        %v308 = vld [vmem:[%s1] sm:$0xff]
        %v309 = vld [vmem:[%s1 + $0x8] sm:$0xff]
        %v310 = vld [vmem:[%s2] sm:$0x1]
        %v312 = vlaneseq
        %v313 = vshrl.u32 %v312, 7
        %v314 = vsub.s32 0, %v313
        %v315 = vrot.slane %v310, %v314
        %vm317 = vcmask 130048
        %v319 = vsel %vm317, %v301, 0
        %v322 = vsel %vm317, %v302, 0
        %v325 = vsel %vm317, %v303, 0
        %v328 = vsel %vm317, %v304, 0
        %v331 = vsel %vm317, %v305, 0
        %v334 = vsel %vm317, %v306, 0
        %v337 = vsel %vm317, %v307, 0
        %339 = vmatprep.subr.mxu0 0.0
        %340 = vmatpush1.msra.mxu0 0.0
        %341 = vmatprep.subr.mxu0 0.0
        %342 = vmatpush1.msra.mxu0 0.0
        %343 = vmatprep.subr.mxu0 0.0
        %344 = vmatpush1.msra.mxu0 0.0
        %345 = vmatprep.subr.mxu0 0.0
        %346 = vmatpush1.msra.mxu0 0.0
        %347 = vmatprep.subr.mxu0 0.0
        %348 = vmatpush1.msra.mxu0 0.0
        %349 = vmatprep.subr.mxu0 0.0
        %350 = vmatpush1.msra.mxu0 0.0
        %351 = vmatprep.subr.mxu0 0.0
        %352 = vmatpush1.msra.mxu0 0.0
        %353 = vmatprep.subr.mxu0 0.0
        %354 = vmatpush1.msra.mxu0 0.0
        %355 = vmatprep.subr.mxu0 0.0
        %356 = vmatpush1.msra.mxu0 0.0
        %357 = vmatprep.subr.mxu0 0.0
        %358 = vmatpush1.msra.mxu0 0.0
        %359 = vmatprep.subr.mxu0 0.0
        %360 = vmatpush1.msra.mxu0 0.0
        %361 = vmatprep.subr.mxu0 0.0
        %362 = vmatpush1.msra.mxu0 0.0
        %363 = vmatprep.subr.mxu0 0.0
        %364 = vmatpush1.msra.mxu0 0.0
        %365 = vmatprep.subr.mxu0 0.0
        %366 = vmatpush1.msra.mxu0 0.0
        %367 = vmatprep.subr.mxu0 0.0
        %368 = vmatpush1.msra.mxu0 %v309
        %369 = vmatprep.subr.mxu0 0.0
        %370 = vmatpush1.msra.mxu0 %v308
        %371 = vmatprep.subr.mxu0 0.0
        %372 = vmatpush2.msra.mxu0 0.0
        %373 = vmatprep.subr.mxu0 0.0
        %374 = vmatpush2.msra.mxu0 0.0
        %375 = vmatprep.subr.mxu0 0.0
        %376 = vmatpush2.msra.mxu0 0.0
        %377 = vmatprep.subr.mxu0 0.0
        %378 = vmatpush2.msra.mxu0 0.0
        %379 = vmatprep.subr.mxu0 0.0
        %380 = vmatpush2.msra.mxu0 0.0
        %381 = vmatprep.subr.mxu0 0.0
        %382 = vmatpush2.msra.mxu0 0.0
        %383 = vmatprep.subr.mxu0 0.0
        %384 = vmatpush2.msra.mxu0 0.0
        %385 = vmatprep.subr.mxu0 0.0
        %386 = vmatpush2.msra.mxu0 0.0
        %387 = vmatprep.subr.mxu0 0.0
        %388 = vmatpush2.msra.mxu0 0.0
        %389 = vmatprep.subr.mxu0 0.0
        %390 = vmatpush2.msra.mxu0 0.0
        %391 = vmatprep.subr.mxu0 0.0
        %392 = vmatpush2.msra.mxu0 0.0
        %393 = vmatprep.subr.mxu0 0.0
        %394 = vmatpush2.msra.mxu0 0.0
        %395 = vmatprep.subr.mxu0 0.0
        %396 = vmatpush2.msra.mxu0 0.0
        %397 = vmatprep.subr.mxu0 0.0
        %398 = vmatpush2.msra.mxu0 0.0
        %399 = vmatprep.subr.mxu0 0.0
        %400 = vmatpush2.msra.mxu0 0.0
        %401 = vmatprep.subr.mxu0 0.0
        %402 = vmatpush2.msra.mxu0 0.0
        %403 = vmatprep.mubr.f32.mxu0 0.0
        %404 = vmatmul.mubr.f32.gmra.mxu0 %v319
        %v405 = vpop.f32.mrf.mxu0
        %v406 = vadd.f32 %v315, %v405
        %v407 = vpop.f32.mrf.mxu0
        %408 = vmatprep.mubr.f32.mxu0 0.0
        %409 = vmatmul.mubr.f32.gmra.mxu0 %v322
        %v410 = vpop.f32.mrf.mxu0
        %v411 = vadd.f32 %v315, %v410
        %v412 = vpop.f32.mrf.mxu0
        %413 = vmatprep.mubr.f32.mxu0 0.0
        %414 = vmatmul.mubr.f32.gmra.mxu0 %v325
        %v415 = vpop.f32.mrf.mxu0
        %v416 = vadd.f32 %v315, %v415
        %v417 = vpop.f32.mrf.mxu0
        %418 = vmatprep.mubr.f32.mxu0 0.0
        %419 = vmatmul.mubr.f32.gmra.mxu0 %v328
        %v420 = vpop.f32.mrf.mxu0
        %v421 = vadd.f32 %v315, %v420
        %v422 = vpop.f32.mrf.mxu0
        %423 = vmatprep.mubr.f32.mxu0 0.0
        %424 = vmatmul.mubr.f32.gmra.mxu0 %v331
        %v425 = vpop.f32.mrf.mxu0
        %v426 = vadd.f32 %v315, %v425
        %v427 = vpop.f32.mrf.mxu0
        %428 = vmatprep.mubr.f32.mxu0 0.0
        %429 = vmatmul.mubr.f32.gmra.mxu0 %v334
        %v430 = vpop.f32.mrf.mxu0
        %v431 = vadd.f32 %v315, %v430
        %v432 = vpop.f32.mrf.mxu0
        %433 = vmatprep.mubr.f32.mxu0 0.0
        %434 = vmatmul.mubr.f32.gmra.mxu0 %v337
        %v435 = vpop.f32.mrf.mxu0
        %v436 = vadd.f32 %v315, %v435
        %v437 = vpop.f32.mrf.mxu0
        %438 = vdwg.mxu0
        %v439 = vmax.f32 %v406, 0.0
        %v440 = vmax.f32 %v411, 0.0
        %v441 = vmax.f32 %v416, 0.0
        %v442 = vmax.f32 %v421, 0.0
        %v443 = vmax.f32 %v426, 0.0
        %v444 = vmax.f32 %v431, 0.0
        %v445 = vmax.f32 %v436, 0.0
        %v446 = vld [vmem:[%s3] sm:$0xff]
        %v447 = vld [vmem:[%s3 + $0x8] sm:$0xff]
        %v448 = vld [vmem:[%s3 + $0x10] sm:$0xff]
        %v449 = vld [vmem:[%s3 + $0x18] sm:$0xff]
        %v450 = vld [vmem:[%s4] sm:$0x1]
        %v452 = vlaneseq
        %v453 = vshrl.u32 %v452, 7
        %v454 = vsub.s32 0, %v453
        %v455 = vrot.slane %v450, %v454
        %vm457 = vcmask 261120
        %v459 = vsel %vm457, %v439, 0
        %v462 = vsel %vm457, %v440, 0
        %v465 = vsel %vm457, %v441, 0
        %v468 = vsel %vm457, %v442, 0
        %v471 = vsel %vm457, %v443, 0
        %v474 = vsel %vm457, %v444, 0
        %v477 = vsel %vm457, %v445, 0
        %479 = vmatprep.subr.mxu0 0.0
        %480 = vmatpush1.msra.mxu0 0.0
        %481 = vmatprep.subr.mxu0 0.0
        %482 = vmatpush1.msra.mxu0 0.0
        %483 = vmatprep.subr.mxu0 0.0
        %484 = vmatpush1.msra.mxu0 0.0
        %485 = vmatprep.subr.mxu0 0.0
        %486 = vmatpush1.msra.mxu0 0.0
        %487 = vmatprep.subr.mxu0 0.0
        %488 = vmatpush1.msra.mxu0 0.0
        %489 = vmatprep.subr.mxu0 0.0
        %490 = vmatpush1.msra.mxu0 0.0
        %491 = vmatprep.subr.mxu0 0.0
        %492 = vmatpush1.msra.mxu0 0.0
        %493 = vmatprep.subr.mxu0 0.0
        %494 = vmatpush1.msra.mxu0 0.0
        %495 = vmatprep.subr.mxu0 0.0
        %496 = vmatpush1.msra.mxu0 0.0
        %497 = vmatprep.subr.mxu0 0.0
        %498 = vmatpush1.msra.mxu0 0.0
        %499 = vmatprep.subr.mxu0 0.0
        %500 = vmatpush1.msra.mxu0 0.0
        %501 = vmatprep.subr.mxu0 0.0
        %502 = vmatpush1.msra.mxu0 0.0
        %503 = vmatprep.subr.mxu0 0.0
        %504 = vmatpush1.msra.mxu0 %v449
        %505 = vmatprep.subr.mxu0 0.0
        %506 = vmatpush1.msra.mxu0 %v448
        %507 = vmatprep.subr.mxu0 0.0
        %508 = vmatpush1.msra.mxu0 %v447
        %509 = vmatprep.subr.mxu0 0.0
        %510 = vmatpush1.msra.mxu0 %v446
        %511 = vmatprep.subr.mxu0 0.0
        %512 = vmatpush2.msra.mxu0 0.0
        %513 = vmatprep.subr.mxu0 0.0
        %514 = vmatpush2.msra.mxu0 0.0
        %515 = vmatprep.subr.mxu0 0.0
        %516 = vmatpush2.msra.mxu0 0.0
        %517 = vmatprep.subr.mxu0 0.0
        %518 = vmatpush2.msra.mxu0 0.0
        %519 = vmatprep.subr.mxu0 0.0
        %520 = vmatpush2.msra.mxu0 0.0
        %521 = vmatprep.subr.mxu0 0.0
        %522 = vmatpush2.msra.mxu0 0.0
        %523 = vmatprep.subr.mxu0 0.0
        %524 = vmatpush2.msra.mxu0 0.0
        %525 = vmatprep.subr.mxu0 0.0
        %526 = vmatpush2.msra.mxu0 0.0
        %527 = vmatprep.subr.mxu0 0.0
        %528 = vmatpush2.msra.mxu0 0.0
        %529 = vmatprep.subr.mxu0 0.0
        %530 = vmatpush2.msra.mxu0 0.0
        %531 = vmatprep.subr.mxu0 0.0
        %532 = vmatpush2.msra.mxu0 0.0
        %533 = vmatprep.subr.mxu0 0.0
        %534 = vmatpush2.msra.mxu0 0.0
        %535 = vmatprep.subr.mxu0 0.0
        %536 = vmatpush2.msra.mxu0 0.0
        %537 = vmatprep.subr.mxu0 0.0
        %538 = vmatpush2.msra.mxu0 0.0
        %539 = vmatprep.subr.mxu0 0.0
        %540 = vmatpush2.msra.mxu0 0.0
        %541 = vmatprep.subr.mxu0 0.0
        %542 = vmatpush2.msra.mxu0 0.0
        %543 = vmatprep.mubr.f32.mxu0 0.0
        %544 = vmatmul.mubr.f32.gmra.mxu0 %v459
        %v545 = vpop.f32.mrf.mxu0
        %v546 = vadd.f32 %v455, %v545
        %v547 = vpop.f32.mrf.mxu0
        %548 = vmatprep.mubr.f32.mxu0 0.0
        %549 = vmatmul.mubr.f32.gmra.mxu0 %v462
        %v550 = vpop.f32.mrf.mxu0
        %v551 = vadd.f32 %v455, %v550
        %v552 = vpop.f32.mrf.mxu0
        %553 = vmatprep.mubr.f32.mxu0 0.0
        %554 = vmatmul.mubr.f32.gmra.mxu0 %v465
        %v555 = vpop.f32.mrf.mxu0
        %v556 = vadd.f32 %v455, %v555
        %v557 = vpop.f32.mrf.mxu0
        %558 = vmatprep.mubr.f32.mxu0 0.0
        %559 = vmatmul.mubr.f32.gmra.mxu0 %v468
        %v560 = vpop.f32.mrf.mxu0
        %v561 = vadd.f32 %v455, %v560
        %v562 = vpop.f32.mrf.mxu0
        %563 = vmatprep.mubr.f32.mxu0 0.0
        %564 = vmatmul.mubr.f32.gmra.mxu0 %v471
        %v565 = vpop.f32.mrf.mxu0
        %v566 = vadd.f32 %v455, %v565
        %v567 = vpop.f32.mrf.mxu0
        %568 = vmatprep.mubr.f32.mxu0 0.0
        %569 = vmatmul.mubr.f32.gmra.mxu0 %v474
        %v570 = vpop.f32.mrf.mxu0
        %v571 = vadd.f32 %v455, %v570
        %v572 = vpop.f32.mrf.mxu0
        %573 = vmatprep.mubr.f32.mxu0 0.0
        %574 = vmatmul.mubr.f32.gmra.mxu0 %v477
        %v575 = vpop.f32.mrf.mxu0
        %v576 = vadd.f32 %v455, %v575
        %v577 = vpop.f32.mrf.mxu0
        %578 = vdwg.mxu0
        %v579 = vmax.f32 %v546, 0.0
        %v580 = vmax.f32 %v551, 0.0
        %v581 = vmax.f32 %v556, 0.0
        %v582 = vmax.f32 %v561, 0.0
        %v583 = vmax.f32 %v566, 0.0
        %v584 = vmax.f32 %v571, 0.0
        %v585 = vmax.f32 %v576, 0.0
        %v586 = vld [vmem:[%s5] sm:$0x1]
        %v588 = vlaneseq
        %v589 = vshrl.u32 %v588, 7
        %v590 = vsub.s32 0, %v589
        %v591 = vrot.slane %v586, %v590
        %v593 = vmul.f32 %v579, %v591
        %v594 = vmul.f32 %v580, %v591
        %v595 = vmul.f32 %v581, %v591
        %v596 = vmul.f32 %v582, %v591
        %v597 = vmul.f32 %v583, %v591
        %v598 = vmul.f32 %v584, %v591
        %v599 = vmul.f32 %v585, %v591
        %v600 = vsel %vm317, %v593, 0.0
        %601 = vadd.xlane.f32.xlu0 %v600
        %v602 = vpop.xlane.xlu0 %601
        %v603 = vsel %vm317, %v594, 0.0
        %604 = vadd.xlane.f32.xlu0 %v603
        %v605 = vpop.xlane.xlu0 %604
        %v606 = vsel %vm317, %v595, 0.0
        %607 = vadd.xlane.f32.xlu0 %v606
        %v608 = vpop.xlane.xlu0 %607
        %v609 = vsel %vm317, %v596, 0.0
        %610 = vadd.xlane.f32.xlu0 %v609
        %v611 = vpop.xlane.xlu0 %610
        %v612 = vsel %vm317, %v597, 0.0
        %613 = vadd.xlane.f32.xlu0 %v612
        %v614 = vpop.xlane.xlu0 %613
        %v615 = vsel %vm317, %v598, 0.0
        %616 = vadd.xlane.f32.xlu0 %v615
        %v617 = vpop.xlane.xlu0 %616
        %v618 = vsel %vm317, %v599, 0.0
        %619 = vadd.xlane.f32.xlu0 %v618
        %v620 = vpop.xlane.xlu0 %619
        %s621 = sld [smem:[#allocation2]]
        %v622 = vstv %s621
        %v623 = vadd.f32 %v602, %v622
        %v624 = vadd.f32 %v605, %v622
        %v625 = vadd.f32 %v608, %v622
        %v626 = vadd.f32 %v611, %v622
        %v627 = vadd.f32 %v614, %v622
        %v628 = vadd.f32 %v617, %v622
        %v629 = vadd.f32 %v620, %v622
        %v630 = vand.u32 2147483647, %v623
        %v631 = vand.u32 2147483647, %v624
        %v632 = vand.u32 2147483647, %v625
        %v633 = vand.u32 2147483647, %v626
        %v634 = vand.u32 2147483647, %v627
        %v635 = vand.u32 2147483647, %v628
        %v636 = vand.u32 2147483647, %v629
        %v637 = vsub.f32 0.0, %v630
        %v638 = vsub.f32 0.0, %v631
        %v639 = vsub.f32 0.0, %v632
        %v640 = vsub.f32 0.0, %v633
        %v641 = vsub.f32 0.0, %v634
        %v642 = vsub.f32 0.0, %v635
        %v643 = vsub.f32 0.0, %v636
        %v644 = vmul.f32 %v637, 1.442695
        %v645 = vpow.pop %v644
        %v646 = vmul.f32 %v638, 1.442695
        %v647 = vpow.pop %v646
        %v648 = vmul.f32 %v639, 1.442695
        %v649 = vpow.pop %v648
        %v650 = vmul.f32 %v640, 1.442695
        %v651 = vpow.pop %v650
        %v652 = vmul.f32 %v641, 1.442695
        %v653 = vpow.pop %v652
        %v654 = vmul.f32 %v642, 1.442695
        %v655 = vpow.pop %v654
        %v656 = vmul.f32 %v643, 1.442695
        %v657 = vpow.pop %v656
        %vm658 = vcmp.ge.f32.partialorder %v623, 0.0
        %vm659 = vcmp.ge.f32.partialorder %v624, 0.0
        %vm660 = vcmp.ge.f32.partialorder %v625, 0.0
        %vm661 = vcmp.ge.f32.partialorder %v626, 0.0
        %vm662 = vcmp.ge.f32.partialorder %v627, 0.0
        %vm663 = vcmp.ge.f32.partialorder %v628, 0.0
        %vm664 = vcmp.ge.f32.partialorder %v629, 0.0
        %v665 = vsel %vm658, 1.0, %v645
        %v666 = vsel %vm659, 1.0, %v647
        %v667 = vsel %vm660, 1.0, %v649
        %v668 = vsel %vm661, 1.0, %v651
        %v669 = vsel %vm662, 1.0, %v653
        %v670 = vsel %vm663, 1.0, %v655
        %v671 = vsel %vm664, 1.0, %v657
        %v672 = vadd.f32 %v645, 1.0
        %v673 = vadd.f32 %v647, 1.0
        %v674 = vadd.f32 %v649, 1.0
        %v675 = vadd.f32 %v651, 1.0
        %v676 = vadd.f32 %v653, 1.0
        %v677 = vadd.f32 %v655, 1.0
        %v678 = vadd.f32 %v657, 1.0
        %v679 = vrcp.pop %v672
        %v680 = vrcp.pop %v673
        %v681 = vrcp.pop %v674
        %v682 = vrcp.pop %v675
        %v683 = vrcp.pop %v676
        %v684 = vrcp.pop %v677
        %v685 = vrcp.pop %v678
        %v686 = vmul.f32 %v665, %v679
        %v687 = vmul.f32 %v666, %v680
        %v688 = vmul.f32 %v667, %v681
        %v689 = vmul.f32 %v668, %v682
        %v690 = vmul.f32 %v669, %v683
        %v691 = vmul.f32 %v670, %v684
        %v692 = vmul.f32 %v671, %v685
        %vm693 = vcmask 7168
        %694 = vst.msk [vmem:[%s281] sm:$0xff] %vm693, %v686
        %695 = vst.msk [vmem:[%s281 + $0x8] sm:$0xff] %vm693, %v687
        %696 = vst.msk [vmem:[%s281 + $0x10] sm:$0xff] %vm693, %v688
        %697 = vst.msk [vmem:[%s281 + $0x18] sm:$0xff] %vm693, %v689
        %698 = vst.msk [vmem:[%s281 + $0x20] sm:$0xff] %vm693, %v690
        %699 = vst.msk [vmem:[%s281 + $0x28] sm:$0xff] %vm693, %v691
        %700 = vst.msk [vmem:[%s281 + $0x30] sm:$0xff] %vm693, %v692
        %s701 = sand.u32 %s179, 1
        %s702 = sand.u32 %s179, 1
        %s703 = smul.addr %s702, 56
        %s704 = scalar_lea.vmem [#allocation3], %s703
        // Predicated region
        $region49: #{tpu_custom_call.1} parent=47 // pred_check
          %p705 = pneg %p189
        $region50: #{tpu_custom_call.1} parent=47 // pred_check_branch
          %707 = sbr.rel (%p705) target = $region52
        $region51: #{tpu_custom_call.1} parent=47 // pred_region
          %s708 = smul.u32 7, %s19
          %s709 = ssub.s32 13, %s708
          %p710 = scmp.lt.s32.totalorder %s709, 7
          %s711 = scalar_select %p710, %s709, 7
          %s712 = smul.u32 128, %s711
          %p713 = scmp.ne.s32.totalorder 0, %s712
          %s714 = smul.addr %s708, 8
          %s715 = scalar_lea.vmem %s7, %s714
          // Predicated region
          $region53: #{tpu_custom_call.1} parent=51 // pred_check
            %p716 = pneg %p713
          $region54: #{tpu_custom_call.1} parent=51 // pred_check_branch
            %718 = sbr.rel (%p716) target = $region56
          $region55: #{tpu_custom_call.1} parent=51 // pred_region
            // Predicated region
            $region57: #{tpu_custom_call.1} parent=55 // pred_check
              _
            $region58: #{tpu_custom_call.1} parent=55 // pred_check_branch
              %720 = sbr.rel (0) target = $region60
            $region59: #{tpu_custom_call.1} parent=55 // pred_region
              // Predicated region
              $region79: #{tpu_custom_call.1} parent=59 // pred_check
                _
              $region80: #{tpu_custom_call.1} parent=59 // pred_check_branch
                %783 = sbr.rel (0) target = $region82
              $region81: #{tpu_custom_call.1} parent=59 // pred_region
                %s784 = sdiv.u32.pop %s711, 7
                %s785 = srem.u32.pop %s711, 7
                // While loop
                $region83: #{tpu_custom_call.1} parent=81 // loop_pre_header
                  _
                $region84: #{tpu_custom_call.1} parent=81 // loop_header
                  %s787 = sphi 0, %s789
                  %p788 = scmp.ge.s32.totalorder %s787, %s784
                  %s792 = sphi 0, %s811
                  %s793 = sphi %s704, %s814
                  %s794 = sphi %s715, %s815
                $region85: #{tpu_custom_call.1} parent=81 // loop_header_branch
                  %791 = sbr.rel (%p788) target = $region89
                $region86: #{tpu_custom_call.1} parent=81 // loop_body
                  %v795 = vld [vmem:[%s793] sm:$0xff]
                  %796 = vst [vmem:[%s794] sm:$0xff] %v795
                  %v797 = vld [vmem:[%s793 + $0x8] sm:$0xff]
                  %798 = vst [vmem:[%s794 + $0x8] sm:$0xff] %v797
                  %v799 = vld [vmem:[%s793 + $0x10] sm:$0xff]
                  %800 = vst [vmem:[%s794 + $0x10] sm:$0xff] %v799
                  %v801 = vld [vmem:[%s793 + $0x18] sm:$0xff]
                  %802 = vst [vmem:[%s794 + $0x18] sm:$0xff] %v801
                  %v803 = vld [vmem:[%s793 + $0x20] sm:$0xff]
                  %804 = vst [vmem:[%s794 + $0x20] sm:$0xff] %v803
                  %v805 = vld [vmem:[%s793 + $0x28] sm:$0xff]
                  %806 = vst [vmem:[%s794 + $0x28] sm:$0xff] %v805
                  %v807 = vld [vmem:[%s793 + $0x30] sm:$0xff]
                  %808 = vst [vmem:[%s794 + $0x30] sm:$0xff] %v807
                  %s809 = sadd.s32 1, %s792
                  %p810 = scmp.ge.s32.totalorder %s809, %s784
                  %s811 = scalar_select %p810, 0, %s809
                  %s812 = smul.u32 %s811, 56
                  %s813 = smul.u32 %s811, 56
                  %s814 = scalar_lea.vmem %s704, %s812 [#allocation3]
                  %s815 = scalar_lea.vmem %s715, %s813
                $region87: #{tpu_custom_call.1} parent=81 // loop_footer
                  %s789 = sadd.s32 %s787, 1
                $region88: #{tpu_custom_call.1} parent=81 // loop_footer_branch
                  %786 = sbr.rel target = $region84
                $region89: #{tpu_custom_call.1} parent=81 // loop_exit
                  _
                %s816 = sdiv.u32.pop %s711, 7
                %s817 = srem.u32.pop %s711, 7
                %s818 = smul.u32 %s816, 7
                %s819 = smul.u32 8, %s818
                %s820 = scalar_lea.vmem %s704, %s819 [#allocation3]
                %s821 = smul.u32 8, %s818
                %s822 = scalar_lea.vmem %s715, %s821
                // While loop
                $region90: #{tpu_custom_call.1} parent=81 // loop_pre_header
                  _
                $region91: #{tpu_custom_call.1} parent=81 // loop_header
                  %s824 = sphi 0, %s826
                  %p825 = scmp.ge.s32.totalorder %s824, %s817
                  %s829 = sphi 0, %s836
                  %s830 = sphi %s820, %s839
                  %s831 = sphi %s822, %s840
                $region92: #{tpu_custom_call.1} parent=81 // loop_header_branch
                  %828 = sbr.rel (%p825) target = $region96
                $region93: #{tpu_custom_call.1} parent=81 // loop_body
                  %v832 = vld [vmem:[%s830] sm:$0xff]
                  %833 = vst [vmem:[%s831] sm:$0xff] %v832
                  %s834 = sadd.s32 1, %s829
                  %p835 = scmp.ge.s32.totalorder %s834, %s817
                  %s836 = scalar_select %p835, 0, %s834
                  %s837 = smul.u32 %s836, 8
                  %s838 = smul.u32 %s836, 8
                  %s839 = scalar_lea.vmem %s820, %s837 [#allocation3]
                  %s840 = scalar_lea.vmem %s822, %s838
                $region94: #{tpu_custom_call.1} parent=81 // loop_footer
                  %s826 = sadd.s32 %s824, 1
                $region95: #{tpu_custom_call.1} parent=81 // loop_footer_branch
                  %823 = sbr.rel target = $region91
                $region96: #{tpu_custom_call.1} parent=81 // loop_exit
                  _
              $region82: #{tpu_custom_call.1} parent=59 // pred_fallthru
                _
              // Predicated region
              $region97: #{tpu_custom_call.1} parent=59 // pred_check
                _
              $region98: #{tpu_custom_call.1} parent=59 // pred_check_branch
                %842 = sbr.rel target = $region100
              $region99: #{tpu_custom_call.1} parent=59 // pred_region
                _
              $region100: #{tpu_custom_call.1} parent=59 // pred_fallthru
                _
            $region60: #{tpu_custom_call.1} parent=55 // pred_fallthru
              _
            // Predicated region
            $region61: #{tpu_custom_call.1} parent=55 // pred_check
              _
            $region62: #{tpu_custom_call.1} parent=55 // pred_check_branch
              %722 = sbr.rel target = $region64
            $region63: #{tpu_custom_call.1} parent=55 // pred_region
              %s724 = ssub.s32 256, 1
              %s725 = sdiv.u32.pop %s711, 7
              %s726 = srem.u32.pop %s711, 7
              // While loop
              $region65: #{tpu_custom_call.1} parent=63 // loop_pre_header
                _
              $region66: #{tpu_custom_call.1} parent=63 // loop_header
                %s728 = sphi 0, %s730
                %p729 = scmp.ge.s32.totalorder %s728, %s725
                %s733 = sphi 0, %s752
                %s734 = sphi %s704, %s755
                %s735 = sphi %s715, %s756
              $region67: #{tpu_custom_call.1} parent=63 // loop_header_branch
                %732 = sbr.rel (%p729) target = $region71
              $region68: #{tpu_custom_call.1} parent=63 // loop_body
                %v736 = vld [vmem:[%s734] sm:%s724]
                %737 = vst [vmem:[%s735] sm:%s724] %v736
                %v738 = vld [vmem:[%s734 + $0x8] sm:%s724]
                %739 = vst [vmem:[%s735 + $0x8] sm:%s724] %v738
                %v740 = vld [vmem:[%s734 + $0x10] sm:%s724]
                %741 = vst [vmem:[%s735 + $0x10] sm:%s724] %v740
                %v742 = vld [vmem:[%s734 + $0x18] sm:%s724]
                %743 = vst [vmem:[%s735 + $0x18] sm:%s724] %v742
                %v744 = vld [vmem:[%s734 + $0x20] sm:%s724]
                %745 = vst [vmem:[%s735 + $0x20] sm:%s724] %v744
                %v746 = vld [vmem:[%s734 + $0x28] sm:%s724]
                %747 = vst [vmem:[%s735 + $0x28] sm:%s724] %v746
                %v748 = vld [vmem:[%s734 + $0x30] sm:%s724]
                %749 = vst [vmem:[%s735 + $0x30] sm:%s724] %v748
                %s750 = sadd.s32 1, %s733
                %p751 = scmp.ge.s32.totalorder %s750, %s725
                %s752 = scalar_select %p751, 0, %s750
                %s753 = smul.u32 %s752, 56
                %s754 = smul.u32 %s752, 56
                %s755 = scalar_lea.vmem %s704, %s753 [#allocation3]
                %s756 = scalar_lea.vmem %s715, %s754
              $region69: #{tpu_custom_call.1} parent=63 // loop_footer
                %s730 = sadd.s32 %s728, 1
              $region70: #{tpu_custom_call.1} parent=63 // loop_footer_branch
                %727 = sbr.rel target = $region66
              $region71: #{tpu_custom_call.1} parent=63 // loop_exit
                _
              %s757 = sdiv.u32.pop %s711, 7
              %s758 = srem.u32.pop %s711, 7
              %s759 = smul.u32 %s757, 7
              %s760 = smul.u32 8, %s759
              %s761 = scalar_lea.vmem %s704, %s760 [#allocation3]
              %s762 = smul.u32 8, %s759
              %s763 = scalar_lea.vmem %s715, %s762
              // While loop
              $region72: #{tpu_custom_call.1} parent=63 // loop_pre_header
                _
              $region73: #{tpu_custom_call.1} parent=63 // loop_header
                %s765 = sphi 0, %s767
                %p766 = scmp.ge.s32.totalorder %s765, %s758
                %s770 = sphi 0, %s777
                %s771 = sphi %s761, %s780
                %s772 = sphi %s763, %s781
              $region74: #{tpu_custom_call.1} parent=63 // loop_header_branch
                %769 = sbr.rel (%p766) target = $region78
              $region75: #{tpu_custom_call.1} parent=63 // loop_body
                %v773 = vld [vmem:[%s771] sm:%s724]
                %774 = vst [vmem:[%s772] sm:%s724] %v773
                %s775 = sadd.s32 1, %s770
                %p776 = scmp.ge.s32.totalorder %s775, %s758
                %s777 = scalar_select %p776, 0, %s775
                %s778 = smul.u32 %s777, 8
                %s779 = smul.u32 %s777, 8
                %s780 = scalar_lea.vmem %s761, %s778 [#allocation3]
                %s781 = scalar_lea.vmem %s763, %s779
              $region76: #{tpu_custom_call.1} parent=63 // loop_footer
                %s767 = sadd.s32 %s765, 1
              $region77: #{tpu_custom_call.1} parent=63 // loop_footer_branch
                %764 = sbr.rel target = $region73
              $region78: #{tpu_custom_call.1} parent=63 // loop_exit
                _
            $region64: #{tpu_custom_call.1} parent=55 // pred_fallthru
              _
          $region56: #{tpu_custom_call.1} parent=51 // pred_fallthru
            _
          %843 = vnop
        $region52: #{tpu_custom_call.1} parent=47 // pred_fallthru
          _
      $region48: #{tpu_custom_call.1} parent=5 // pred_fallthru
        _
      %p844 = scmp.le.s32.totalorder 2, %s14
      // Predicated region
      $region101: #{tpu_custom_call.1} parent=5 // pred_check
        %p845 = pneg %p844
      $region102: #{tpu_custom_call.1} parent=5 // pred_check_branch
        %847 = sbr.rel (%p845) target = $region104
      $region103: #{tpu_custom_call.1} parent=5 // pred_region
        %s848 = ssub.s32 %s14, 2
        // Predicated region
        $region105: #{tpu_custom_call.1} parent=103 // pred_check
          %p849 = pneg %p195
        $region106: #{tpu_custom_call.1} parent=103 // pred_check_branch
          %851 = sbr.rel (%p849) target = $region108
        $region107: #{tpu_custom_call.1} parent=103 // pred_region
          %s852 = sand.u32 %s180, 1
          %s853 = sand.u32 %s180, 1
          %s854 = smul.addr %s853, 56
          %s855 = scalar_lea.vmem [#allocation3], %s854
        $region108: #{tpu_custom_call.1} parent=103 // pred_fallthru
          _
      $region104: #{tpu_custom_call.1} parent=5 // pred_fallthru
        _
    $region6: #{tpu_custom_call.1} parent=1 // loop_footer
      %s18 = sadd.s32 1, %s14
    $region7: #{tpu_custom_call.1} parent=1 // loop_footer_branch
      %13 = sbr.rel target = $region3
    $region8: #{tpu_custom_call.1} parent=1 // loop_exit
      _

</llo_original>
